<compile_context>
chip_gen: v6e
topology: v6e:2x2x1
jax: 0.10.0
libtpu: 0.0.40
codegen_flags: <defaults>
</compile_context>

<pallas_src>
import functools

import jax
import jax.numpy as jnp
from jax.experimental import pallas as pl
from jax.experimental.pallas import tpu as pltpu


def _round_up(v, m):
    return ((v + m - 1) // m) * m


def _vmem_limit_bytes():
    try:
        cap = int(pltpu.get_tpu_info().vmem_capacity_bytes)
    except Exception:
        cap = 64 * 1024 * 1024
    return min((cap * 3) // 4, 100 * 1024 * 1024)


def _pick_row_tile(Ho, Wo, target_rows=256):
    """Output-row tile TRo (divides Ho) so the per-step accumulator stays small."""
    cands = {Ho}  # full height is always a legal block (dim == full dim)
    for t in range(1, Ho + 1):
        if Ho % t == 0 and (t * Wo) % 8 == 0:
            cands.add(t)
    under = [t for t in cands if t * Wo <= target_rows]
    return max(under) if under else min(cands)


def _pick_flat_tile(total_rows, target=1024):
    """Row-chunk (multiple of 8, divides total_rows) for the flattened BN pass."""
    best = None
    for t in range(8, min(total_rows, target) + 1, 8):
        if total_rows % t == 0:
            best = t
    return best if best is not None else total_rows


def _conv_kernel(*refs, K, stride, padding, TRo, Wo, Cin, Cp,
                 add_bias, apply_relu, fuse_residual, emit_stats):
    # refs: x (Hp, Wp, Cin) bf16, w (K*K*Cin, Cp) bf16, b (1, Cp) f32,
    #       out (TRo*Wo, Cp), [stats (2, Cp) f32]
    x_ref, w_ref, b_ref = refs[0], refs[1], refs[2]
    out_ref = refs[3]
    stats_ref = refs[4] if emit_stats else None

    r = pl.program_id(1)
    row0 = r * (TRo * stride)                   # first padded-image row of this band
    band_rows = (TRo - 1) * stride + K
    band = x_ref[pl.ds(row0, band_rows), :, :]  # (band_rows, Wp, Cin) bf16

    # im2col in VMEM: one (rows, K*K*Cin) patch -> single MXU contraction.
    cols = []
    for ki in range(K):
        for kj in range(K):
            if stride == 1:
                cols.append(band[ki:ki + TRo, kj:kj + Wo, :])
            else:
                # TODO(synk): strided lax.slice path is untested on this chip gen.
                cols.append(jax.lax.slice(
                    band, (ki, kj, 0),
                    (ki + stride * (TRo - 1) + 1, kj + stride * (Wo - 1) + 1, Cin),
                    (stride, stride, 1)))
    patch = jnp.concatenate(cols, axis=-1).reshape(TRo * Wo, K * K * Cin)

    acc = jnp.dot(patch, w_ref[...], preferred_element_type=jnp.float32)
    if add_bias:                                 # bias is folded into BN shift otherwise
        acc = acc + b_ref[...]

    if emit_stats:
        # Partial (sum, sum_sq) of the bias-free conv output: exact train-mode
        # batch stats after the cross-tile reduction in the wrapper.
        s = jnp.sum(acc, axis=0, keepdims=True)
        sq = jnp.sum(acc * acc, axis=0, keepdims=True)
        stats_ref[...] = jnp.concatenate([s, sq], axis=0)

    if apply_relu:
        acc = jnp.maximum(acc, 0.0)

    if fuse_residual:
        # Residual rows come straight from the resident padded-image block.
        res = x_ref[pl.ds(padding + r * TRo, TRo), pl.ds(padding, Wo), :]
        res = res.reshape(TRo * Wo, Cin).astype(jnp.float32)
        if Cp > Cin:
            res = jnp.concatenate(
                [res, jnp.zeros((TRo * Wo, Cp - Cin), jnp.float32)], axis=-1)
        acc = acc + res

    out_ref[...] = acc.astype(out_ref.dtype)


def _bn_apply_kernel(*refs, use_residual, Cp, Cin):
    # refs: y (TR, Cp) bf16, scale (1, Cp) f32, shift (1, Cp) f32,
    #       [resid (TR, Cin) bf16], out (TR, Cp) bf16
    y_ref, scale_ref, shift_ref = refs[0], refs[1], refs[2]
    resid_ref = refs[3] if use_residual else None
    out_ref = refs[-1]

    t = y_ref[...].astype(jnp.float32) * scale_ref[...] + shift_ref[...]
    t = jnp.maximum(t, 0.0)                      # ReLU
    if use_residual:
        res = resid_ref[...].astype(jnp.float32)
        if Cp > Cin:
            res = jnp.concatenate(
                [res, jnp.zeros((res.shape[0], Cp - Cin), jnp.float32)], axis=-1)
        t = t + res
    out_ref[...] = t.astype(out_ref.dtype)


def conv_block_forward(x_nchw, weight, bias, gamma, beta, *, stride, padding,
                       use_batch_norm, use_residual, eps=1e-5,
                       compute_dtype=jnp.bfloat16):
    N, Cin, H, W = x_nchw.shape
    Cout, _, K, _ = weight.shape
    Ho = (H + 2 * padding - K) // stride + 1
    Wo = (W + 2 * padding - K) // stride + 1
    HoWo = Ho * Wo
    Hp, Wp = H + 2 * padding, W + 2 * padding
    Cp = _round_up(Cout, 128)                    # lane-dense output channels

    if use_residual and not (Cout == Cin and Ho == H and Wo == W):
        raise ValueError("residual connection requires Cout==Cin and same spatial size")

    # NCHW -> NHWC bf16 (single transpose+cast), zero-pad spatially.
    x_nhwc = jnp.transpose(x_nchw, (0, 2, 3, 1)).astype(compute_dtype)
    xp = jnp.pad(x_nhwc, ((0, 0), (padding, padding), (padding, padding), (0, 0)))

    # Weights: [Cout, Cin, K, K] -> [K*K*Cin, Cp] (tap-major, channel-minor), bf16.
    w2 = jnp.transpose(weight, (2, 3, 1, 0)).reshape(K * K * Cin, Cout)
    w2 = jnp.pad(w2, ((0, 0), (0, Cp - Cout))).astype(compute_dtype)
    b_row = jnp.pad(bias.astype(jnp.float32), (0, Cp - Cout)).reshape(1, Cp)

    TRo = _pick_row_tile(Ho, Wo)
    R = Ho // TRo

    vmem_limit = _vmem_limit_bytes()
    cparams = pltpu.CompilerParams(
        dimension_semantics=("parallel", "parallel"),
        vmem_limit_bytes=vmem_limit)

    fuse_residual = use_residual and not use_batch_norm

    conv_kernel = functools.partial(
        _conv_kernel, K=K, stride=stride, padding=padding, TRo=TRo, Wo=Wo,
        Cin=Cin, Cp=Cp, add_bias=not use_batch_norm,
        apply_relu=not use_batch_norm, fuse_residual=fuse_residual,
        emit_stats=use_batch_norm)

    in_specs = [
        pl.BlockSpec((None, Hp, Wp, Cin), lambda n, r: (n, 0, 0, 0)),   # image resident per n
        pl.BlockSpec((K * K * Cin, Cp), lambda n, r: (0, 0)),            # weights resident
        pl.BlockSpec((1, Cp), lambda n, r: (0, 0)),
    ]
    y_spec = pl.BlockSpec((None, TRo * Wo, Cp), lambda n, r: (n, r, 0))
    y_shape = jax.ShapeDtypeStruct((N, HoWo, Cp), compute_dtype)

    if use_batch_norm:
        out_shape = (y_shape, jax.ShapeDtypeStruct((N, R, 2, Cp), jnp.float32))
        out_specs = (y_spec,
                     pl.BlockSpec((None, None, 2, Cp), lambda n, r: (n, r, 0, 0)))
    else:
        out_shape = y_shape
        out_specs = y_spec

    conv_out = pl.pallas_call(
        conv_kernel,
        out_shape=out_shape,
        grid=(N, R),
        in_specs=in_specs,
        out_specs=out_specs,
        compiler_params=cparams,
    )(xp, w2, b_row)

    if use_batch_norm:
        y, stats = conv_out
        # Exact train-mode batch statistics (biased variance) from the partial
        # bias-free sums; the conv bias is folded analytically into scale/shift,
        # which removes the dominant mean shift from E[x^2]-E[x]^2.
        m_total = N * HoWo
        ch_sum = jnp.sum(stats[:, :, 0, :], axis=(0, 1))
        ch_sq = jnp.sum(stats[:, :, 1, :], axis=(0, 1))
        mu_c = ch_sum / m_total                         # mean of (conv without bias)
        var = jnp.maximum(ch_sq / m_total - mu_c * mu_c, 0.0)
        gamma_p = jnp.pad(gamma.astype(jnp.float32), (0, Cp - Cout))
        beta_p = jnp.pad(beta.astype(jnp.float32), (0, Cp - Cout))
        scale_v = gamma_p * jax.lax.rsqrt(var + eps)
        shift_v = beta_p - mu_c * scale_v               # bias cancels against the mean
        scale_row = scale_v.reshape(1, Cp)
        shift_row = shift_v.reshape(1, Cp)

        total_rows = N * HoWo
        TR = _pick_flat_tile(total_rows)
        y_flat = y.reshape(total_rows, Cp)

        bn_in = [y_flat, scale_row, shift_row]
        bn_specs = [
            pl.BlockSpec((TR, Cp), lambda i: (i, 0)),
            pl.BlockSpec((1, Cp), lambda i: (0, 0)),
            pl.BlockSpec((1, Cp), lambda i: (0, 0)),
        ]
        if use_residual:
            resid_flat = x_nhwc.reshape(total_rows, Cin)   # no lane-padded HBM copy
            bn_in.append(resid_flat)
            bn_specs.append(pl.BlockSpec((TR, Cin), lambda i: (i, 0)))

        out_flat = pl.pallas_call(
            functools.partial(_bn_apply_kernel, use_residual=use_residual,
                              Cp=Cp, Cin=Cin),
            out_shape=jax.ShapeDtypeStruct((total_rows, Cp), compute_dtype),
            grid=(total_rows // TR,),
            in_specs=bn_specs,
            out_specs=pl.BlockSpec((TR, Cp), lambda i: (i, 0)),
            compiler_params=pltpu.CompilerParams(
                dimension_semantics=("parallel",), vmem_limit_bytes=vmem_limit),
        )(*bn_in)
        out_flat = out_flat.reshape(N, HoWo, Cp)
    else:
        out_flat = conv_out

    out = out_flat[:, :, :Cout].reshape(N, Ho, Wo, Cout)
    return jnp.transpose(out, (0, 3, 1, 2)).astype(jnp.float32)   # back to NCHW f32


def _reference_forward(x, weight, bias, gamma, beta, *, stride, padding,
                       use_batch_norm, use_residual, eps=1e-5):
    out = jax.lax.conv_general_dilated(
        x, weight, window_strides=(stride, stride),
        padding=[(padding, padding), (padding, padding)],
        dimension_numbers=("NCHW", "OIHW", "NCHW"))
    out = out + bias.reshape(1, -1, 1, 1)
    if use_batch_norm:
        mean = jnp.mean(out, axis=(0, 2, 3), keepdims=True)
        var = jnp.mean((out - mean) ** 2, axis=(0, 2, 3), keepdims=True)
        out = (out - mean) * jax.lax.rsqrt(var + eps)
        out = out * gamma.reshape(1, -1, 1, 1) + beta.reshape(1, -1, 1, 1)
    out = jnp.maximum(out, 0.0)
    if use_residual:
        out = out + x
    return out


def _run_case(key, *, N, Cin, H, W, Cout, K, stride, padding,
              use_batch_norm, use_residual):
    k1, k2, k3 = jax.random.split(key, 3)
    x = jax.random.normal(k1, (N, Cin, H, W), dtype=jnp.float32)
    weight = 0.1 * jax.random.normal(k2, (Cout, Cin, K, K), dtype=jnp.float32)
    bias = 0.1 * jax.random.normal(k3, (Cout,), dtype=jnp.float32)
    gamma = jnp.ones((Cout,), dtype=jnp.float32)     # BatchNorm2d default weight
    beta = jnp.zeros((Cout,), dtype=jnp.float32)     # BatchNorm2d default bias

    out = conv_block_forward(x, weight, bias, gamma, beta,
                             stride=stride, padding=padding,
                             use_batch_norm=use_batch_norm,
                             use_residual=use_residual)
    jax.block_until_ready(out)

    ref = _reference_forward(x, weight, bias, gamma, beta,
                             stride=stride, padding=padding,
                             use_batch_norm=use_batch_norm,
                             use_residual=use_residual)
    Ho = (H + 2 * padding - K) // stride + 1
    Wo = (W + 2 * padding - K) // stride + 1
    assert out.shape == (N, Cout, Ho, Wo)
    err = float(jnp.max(jnp.abs(out - ref)))
    # bf16 activations/weights/intermediates => ~2 decimal digits vs f32 reference.
    assert jnp.allclose(out, ref, atol=1e-1, rtol=1e-1), f"max abs err {err}"


if __name__ == "__main__":
    key = jax.random.PRNGKey(0)
    k1, k2, k3, k4 = jax.random.split(key, 4)

    # 1) BatchNorm + residual (two-pass path, in-kernel channel-padded residual).
    _run_case(k1, N=2, Cin=4, H=16, W=16, Cout=4, K=3, stride=1, padding=1,
              use_batch_norm=True, use_residual=True)

    # 2) Plain conv + ReLU with residual fused in the conv kernel (no BN).
    _run_case(k2, N=2, Cin=4, H=16, W=16, Cout=4, K=3, stride=1, padding=1,
              use_batch_norm=False, use_residual=True)

    # 3) BatchNorm, larger spatial size -> multiple row tiles (grid=(N, 4)) and
    #    multiple BN-apply chunks; Cout != Cin.
    _run_case(k3, N=2, Cin=4, H=32, W=32, Cout=8, K=3, stride=1, padding=1,
              use_batch_norm=True, use_residual=False)

    # 4) Plain conv + ReLU, Cout != Cin, single fused pass.
    _run_case(k4, N=2, Cin=4, H=16, W=16, Cout=8, K=3, stride=1, padding=1,
              use_batch_norm=False, use_residual=False)

    print("KERNEL_OK")
</pallas_src>

<mosaic_0001>
module attributes {stable_mosaic.version = 11 : i64} {
  func.func @_conv_kernel(%arg0: i32, %arg1: i32, %arg2: memref<1x18x18x4xbf16, #tpu.memory_space<vmem>>, %arg3: memref<36x128xbf16, #tpu.memory_space<vmem>>, %arg4: memref<1x128xf32, #tpu.memory_space<vmem>>, %arg5: memref<1x256x128xbf16, #tpu.memory_space<vmem>>, %arg6: memref<1x1x2x128xf32, #tpu.memory_space<vmem>>) attributes {dimension_semantics = [#tpu.dimension_semantics<parallel>, #tpu.dimension_semantics<parallel>], iteration_bounds = array<i64: 2, 1>, scalar_prefetch = 0 : i64, scratch_operands = 0 : i64, tpu.core_type = #tpu.core_type<tc>, window_params = [{transform_indices = @transform_0, window_bounds = array<i64: 1, 18, 18, 4>}, {pipeline_mode = #tpu.pipeline_mode<synchronous>, transform_indices = @transform_1, window_bounds = array<i64: 36, 128>}, {pipeline_mode = #tpu.pipeline_mode<synchronous>, transform_indices = @transform_2, window_bounds = array<i64: 1, 128>}, {transform_indices = @transform_3, window_bounds = array<i64: 1, 256, 128>}, {transform_indices = @transform_4, window_bounds = array<i64: 1, 1, 2, 128>}]} {
    %c16_i32 = arith.constant 16 : i32
    %0 = arith.muli %arg1, %c16_i32 : i32
    %c0 = arith.constant 0 : index
    %1 = arith.index_cast %0 : i32 to index
    %c0_0 = arith.constant 0 : index
    %c0_1 = arith.constant 0 : index
    %2 = vector.load %arg2[%c0, %1, %c0_0, %c0_1] : memref<1x18x18x4xbf16, #tpu.memory_space<vmem>>, vector<1x18x18x4xbf16>
    %3 = vector.shape_cast %2 : vector<1x18x18x4xbf16> to vector<18x18x4xbf16>
    %4 = vector.extract_strided_slice %3 {offsets = [0, 0, 0], sizes = [16, 16, 4], strides = [1, 1, 1]} : vector<18x18x4xbf16> to vector<16x16x4xbf16>
    %5 = vector.extract_strided_slice %3 {offsets = [0, 1, 0], sizes = [16, 16, 4], strides = [1, 1, 1]} : vector<18x18x4xbf16> to vector<16x16x4xbf16>
    %6 = vector.extract_strided_slice %3 {offsets = [0, 2, 0], sizes = [16, 16, 4], strides = [1, 1, 1]} : vector<18x18x4xbf16> to vector<16x16x4xbf16>
    %7 = vector.extract_strided_slice %3 {offsets = [1, 0, 0], sizes = [16, 16, 4], strides = [1, 1, 1]} : vector<18x18x4xbf16> to vector<16x16x4xbf16>
    %8 = vector.extract_strided_slice %3 {offsets = [1, 1, 0], sizes = [16, 16, 4], strides = [1, 1, 1]} : vector<18x18x4xbf16> to vector<16x16x4xbf16>
    %9 = vector.extract_strided_slice %3 {offsets = [1, 2, 0], sizes = [16, 16, 4], strides = [1, 1, 1]} : vector<18x18x4xbf16> to vector<16x16x4xbf16>
    %10 = vector.extract_strided_slice %3 {offsets = [2, 0, 0], sizes = [16, 16, 4], strides = [1, 1, 1]} : vector<18x18x4xbf16> to vector<16x16x4xbf16>
    %11 = vector.extract_strided_slice %3 {offsets = [2, 1, 0], sizes = [16, 16, 4], strides = [1, 1, 1]} : vector<18x18x4xbf16> to vector<16x16x4xbf16>
    %12 = vector.extract_strided_slice %3 {offsets = [2, 2, 0], sizes = [16, 16, 4], strides = [1, 1, 1]} : vector<18x18x4xbf16> to vector<16x16x4xbf16>
    %13 = tpu.concatenate %4, %5, %6, %7, %8, %9, %10, %11, %12 in 2 : vector<16x16x4xbf16>, vector<16x16x4xbf16>, vector<16x16x4xbf16>, vector<16x16x4xbf16>, vector<16x16x4xbf16>, vector<16x16x4xbf16>, vector<16x16x4xbf16>, vector<16x16x4xbf16>, vector<16x16x4xbf16> -> vector<16x16x36xbf16>
    %14 = vector.shape_cast %13 : vector<16x16x36xbf16> to vector<256x36xbf16>
    %c0_2 = arith.constant 0 : index
    %c0_3 = arith.constant 0 : index
    %15 = vector.load %arg3[%c0_2, %c0_3] : memref<36x128xbf16, #tpu.memory_space<vmem>>, vector<36x128xbf16>
    %cst = arith.constant dense<0.000000e+00> : vector<256x128xf32>
    %16 = tpu.matmul %14, %15, %cst {dimension_numbers = #tpu.dot_dimension_numbers<[1], [0], [0], [1], [0, 0, 1, 1], [], []>} : vector<256x36xbf16>, vector<36x128xbf16>, vector<256x128xf32> -> vector<256x128xf32>
    %cst_4 = arith.constant dense<0.000000e+00> : vector<128xf32>
    %17 = vector.multi_reduction <add>, %16, %cst_4 [0] : vector<256x128xf32> to vector<128xf32>
    %18 = vector.shape_cast %17 : vector<128xf32> to vector<1x128xf32>
    %19 = arith.mulf %16, %16 : vector<256x128xf32>
    %cst_5 = arith.constant dense<0.000000e+00> : vector<128xf32>
    %20 = vector.multi_reduction <add>, %19, %cst_5 [0] : vector<256x128xf32> to vector<128xf32>
    %21 = vector.shape_cast %20 : vector<128xf32> to vector<1x128xf32>
    %22 = tpu.concatenate %18, %21 in 0 : vector<1x128xf32>, vector<1x128xf32> -> vector<2x128xf32>
    %c0_6 = arith.constant 0 : index
    %c0_7 = arith.constant 0 : index
    %c0_8 = arith.constant 0 : index
    %c0_9 = arith.constant 0 : index
    %23 = vector.load %arg6[%c0_6, %c0_7, %c0_8, %c0_9] : memref<1x1x2x128xf32, #tpu.memory_space<vmem>>, vector<1x1x2x128xf32>
    %24 = vector.shape_cast %23 : vector<1x1x2x128xf32> to vector<2x128xf32>
    %25 = vector.shape_cast %22 : vector<2x128xf32> to vector<1x1x2x128xf32>
    tpu.vector_store %arg6[%c0_6, %c0_7, %c0_8, %c0_9], %25 {strides = array<i32>} : memref<1x1x2x128xf32, #tpu.memory_space<vmem>>, vector<1x1x2x128xf32>,
    %26 = arith.truncf %16 : vector<256x128xf32> to vector<256x128xbf16>
    %c0_10 = arith.constant 0 : index
    %c0_11 = arith.constant 0 : index
    %c0_12 = arith.constant 0 : index
    %27 = vector.load %arg5[%c0_10, %c0_11, %c0_12] : memref<1x256x128xbf16, #tpu.memory_space<vmem>>, vector<1x256x128xbf16>
    %28 = vector.shape_cast %27 : vector<1x256x128xbf16> to vector<256x128xbf16>
    %29 = vector.shape_cast %26 : vector<256x128xbf16> to vector<1x256x128xbf16>
    tpu.vector_store %arg5[%c0_10, %c0_11, %c0_12], %29 {strides = array<i32>} : memref<1x256x128xbf16, #tpu.memory_space<vmem>>, vector<1x256x128xbf16>,
    return
  }
  func.func @transform_0(%arg0: i32, %arg1: i32) -> (i32, i32, i32, i32) {
    %c0_i32 = arith.constant 0 : i32
    %c0_i32_0 = arith.constant 0 : i32
    %c0_i32_1 = arith.constant 0 : i32
    %c0_i32_2 = arith.constant 0 : i32
    return %arg0, %c0_i32, %c0_i32_0, %c0_i32_1 : i32, i32, i32, i32
  }
  func.func @transform_1(%arg0: i32, %arg1: i32) -> (i32, i32) {
    %c0_i32 = arith.constant 0 : i32
    %c0_i32_0 = arith.constant 0 : i32
    %c0_i32_1 = arith.constant 0 : i32
    return %c0_i32, %c0_i32_0 : i32, i32
  }
  func.func @transform_2(%arg0: i32, %arg1: i32) -> (i32, i32) {
    %c0_i32 = arith.constant 0 : i32
    %c0_i32_0 = arith.constant 0 : i32
    %c0_i32_1 = arith.constant 0 : i32
    return %c0_i32, %c0_i32_0 : i32, i32
  }
  func.func @transform_3(%arg0: i32, %arg1: i32) -> (i32, i32, i32) {
    %c0_i32 = arith.constant 0 : i32
    %c0_i32_0 = arith.constant 0 : i32
    return %arg0, %arg1, %c0_i32 : i32, i32, i32
  }
  func.func @transform_4(%arg0: i32, %arg1: i32) -> (i32, i32, i32, i32) {
    %c0_i32 = arith.constant 0 : i32
    %c0_i32_0 = arith.constant 0 : i32
    %c0_i32_1 = arith.constant 0 : i32
    return %arg0, %arg1, %c0_i32, %c0_i32_0 : i32, i32, i32, i32
  }
}

</mosaic_0001>

<llo_original>
// kernel: tpu_custom_call.1
$region0: #{tpu_custom_call.1}
  #allocation0 [shape = 'u32[]', space=smem, size = 0x4, offset = 0x4, fixed_abs, tag = 'smem constant byte address 0x4 - core index']
  #allocation1 [shape = 'u32[144,128]{1,0:T(1,128)}', space=vmem, size = 0x12000, scoped, tag = 'internal scratch']
  %s0 = inlined_call_operand.vmem [shape: bf16[2,18,18,4], index: 0, kind: input, shape index: {}]
  %s1 = inlined_call_operand.vmem [shape: bf16[36,128], index: 1, kind: input, shape index: {}]
  %s2 = inlined_call_operand.vmem [shape: f32[1,128], index: 2, kind: input, shape index: {}]
  %s3 = inlined_call_operand.hbm [shape: bf16[2,256,128], index: 3, kind: output, shape index: {0}]
  %s4 = inlined_call_operand.hbm [shape: f32[2,1,2,128], index: 4, kind: output, shape index: {1}]
  %5 = xla_tuple %s3, %s4
  %s6 = sld [smem:[#allocation0]]
  $region53: #{tpu_custom_call.1} parent=0
    _
  %s8 = ssub.s32 1, %s6
  %s9 = scalar_select 0, %s8, %s6
  $region1: #{tpu_custom_call.1} parent=0
    #allocation2 [shape = 'u8[131072]{0}', space=vmem, size = 0x20000, scoped, tag = 'output window, operand 0']
    #allocation3 [shape = 's32[2]{0}', space=sflag, size = 0x8, scoped, tag = 'scoped memory for tpu_custom_call.1']
    #allocation4 [shape = 'u8[2048]{0}', space=vmem, size = 0x800, scoped, tag = 'output window, operand 1']
    #allocation5 [shape = 's32[2]{0}', space=sflag, size = 0x8, scoped, tag = 'scoped memory for tpu_custom_call.1']
    %10 = vsyncpa [#allocation3], 0
    %s11 = scalar_lea.sflag [#allocation3], 1
    %12 = vsyncpa %s11, 0
    %13 = vsyncpa [#allocation5], 0
    %s14 = scalar_lea.sflag [#allocation5], 1
    %15 = vsyncpa %s14, 0
    loop: start=0, step=1, limit=4
    $region2: #{tpu_custom_call.1} parent=1 // loop_pre_header
      _
    $region3: #{tpu_custom_call.1} parent=1 // loop_header
      %s17 = sphi 0, %s21
      %p18 = scmp.ge.s32.totalorder %s17, 4
      %s24 = sphi 0, %s36
      %s25 = sphi 0, %s32
      %s26 = sphi 0, %s24
      %s27 = sphi 0, %s25
      %s28 = sphi 0, %s26
      %s29 = sphi 0, %s27
      %s39 = sphi 0, %s41
      %s42 = sphi 0, %s39
      %s43 = sphi 0, %s42
      %s59 = sphi 0, %s43
      %s63 = sphi 0, %s63
      %s65 = sphi 0, %s63
      %s66 = sphi 0, %s65
      %s80 = sphi 0, %s66
      %s84 = sphi 0, %s84
      %s86 = sphi 0, %s84
      %s87 = sphi 0, %s86
      %s101 = sphi 0, %s87
      %s109 = sphi 0, %s111
      %s112 = sphi 0, %s109
      %s113 = sphi 0, %s112
      %s129 = sphi 0, %s113
      %s137 = sphi 0, %s139
      %s140 = sphi 0, %s137
      %s141 = sphi 0, %s140
      %s157 = sphi 0, %s141
    $region4: #{tpu_custom_call.1} parent=1 // loop_header_branch
      %20 = sbr.rel (%p18) target = $region8
    $region5: #{tpu_custom_call.1} parent=1 // loop_body
      %s22 = ssub.s32 %s17, 1
      %s23 = ssub.s32 %s17, 2
      %s30 = sadd.s32 1, %s25
      %p31 = scmp.ge.s32.totalorder %s30, 1
      %s32 = scalar_select %p31, 0, %s30
      %s33 = sadd.s32 1, %s24
      %s34 = scalar_select %p31, %s33, %s24
      %p35 = scmp.ge.s32.totalorder %s34, 2
      %s36 = scalar_select %p35, 0, %s34
      %s37 = ssub.s32 %s24, %s36
      %p38 = scmp.eq.s32.totalorder %s37, 0
      %s40 = sadd.s32 %s39, 1
      %s41 = scalar_select %p38, %s39, %s40
      %p44 = pneg %p38
      %p45 = scmp.eq.s32.totalorder %s17, 1
      %p46 = por %p44, %p45
      %p47 = scmp.ne.s32.totalorder %s39, %s42
      %p48 = scmp.eq.s32.totalorder %s17, 0
      %p49 = por %p47, %p48
      %p50 = scmp.ne.s32.totalorder %s39, %s42
      %p51 = scmp.eq.s32.totalorder %s22, 1
      %p52 = por %p50, %p51
      %p53 = scmp.ne.s32.totalorder %s42, %s43
      %p54 = scmp.eq.s32.totalorder %s22, 0
      %p55 = por %p53, %p54
      %p56 = scmp.ne.s32.totalorder %s42, %s43
      %p57 = scmp.eq.s32.totalorder %s23, 1
      %p58 = por %p56, %p57
      %p60 = scmp.ne.s32.totalorder %s43, %s59
      %p61 = scmp.eq.s32.totalorder %s23, 0
      %p62 = por %p60, %p61
      %s64 = sadd.s32 %s63, 1
      %p67 = scmp.eq.s32.totalorder %s17, 1
      %p68 = scmp.ne.s32.totalorder %s63, %s65
      %p69 = scmp.eq.s32.totalorder %s17, 0
      %p70 = por %p68, %p69
      %p71 = scmp.ne.s32.totalorder %s63, %s65
      %p72 = scmp.eq.s32.totalorder %s22, 1
      %p73 = por %p71, %p72
      %p74 = scmp.ne.s32.totalorder %s65, %s66
      %p75 = scmp.eq.s32.totalorder %s22, 0
      %p76 = por %p74, %p75
      %p77 = scmp.ne.s32.totalorder %s65, %s66
      %p78 = scmp.eq.s32.totalorder %s23, 1
      %p79 = por %p77, %p78
      %p81 = scmp.ne.s32.totalorder %s66, %s80
      %p82 = scmp.eq.s32.totalorder %s23, 0
      %p83 = por %p81, %p82
      %s85 = sadd.s32 %s84, 1
      %p88 = scmp.eq.s32.totalorder %s17, 1
      %p89 = scmp.ne.s32.totalorder %s84, %s86
      %p90 = scmp.eq.s32.totalorder %s17, 0
      %p91 = por %p89, %p90
      %p92 = scmp.ne.s32.totalorder %s84, %s86
      %p93 = scmp.eq.s32.totalorder %s22, 1
      %p94 = por %p92, %p93
      %p95 = scmp.ne.s32.totalorder %s86, %s87
      %p96 = scmp.eq.s32.totalorder %s22, 0
      %p97 = por %p95, %p96
      %p98 = scmp.ne.s32.totalorder %s86, %s87
      %p99 = scmp.eq.s32.totalorder %s23, 1
      %p100 = por %p98, %p99
      %p102 = scmp.ne.s32.totalorder %s87, %s101
      %p103 = scmp.eq.s32.totalorder %s23, 0
      %p104 = por %p102, %p103
      %s105 = ssub.s32 %s24, %s36
      %s106 = ssub.s32 %s25, %s32
      %s107 = sor.u32 %s105, %s106
      %p108 = scmp.eq.s32.totalorder %s107, 0
      %s110 = sadd.s32 %s109, 1
      %s111 = scalar_select %p108, %s109, %s110
      %p114 = pneg %p108
      %p115 = scmp.eq.s32.totalorder %s17, 1
      %p116 = por %p114, %p115
      %p117 = scmp.ne.s32.totalorder %s109, %s112
      %p118 = scmp.eq.s32.totalorder %s17, 0
      %p119 = por %p117, %p118
      %p120 = scmp.ne.s32.totalorder %s109, %s112
      %p121 = scmp.eq.s32.totalorder %s22, 1
      %p122 = por %p120, %p121
      %p123 = scmp.ne.s32.totalorder %s112, %s113
      %p124 = scmp.eq.s32.totalorder %s22, 0
      %p125 = por %p123, %p124
      %p126 = scmp.ne.s32.totalorder %s112, %s113
      %p127 = scmp.eq.s32.totalorder %s23, 1
      %p128 = por %p126, %p127
      %p130 = scmp.ne.s32.totalorder %s113, %s129
      %p131 = scmp.eq.s32.totalorder %s23, 0
      %p132 = por %p130, %p131
      %s133 = ssub.s32 %s24, %s36
      %s134 = ssub.s32 %s25, %s32
      %s135 = sor.u32 %s133, %s134
      %p136 = scmp.eq.s32.totalorder %s135, 0
      %s138 = sadd.s32 %s137, 1
      %s139 = scalar_select %p136, %s137, %s138
      %p142 = pneg %p136
      %p143 = scmp.eq.s32.totalorder %s17, 1
      %p144 = por %p142, %p143
      %p145 = scmp.ne.s32.totalorder %s137, %s140
      %p146 = scmp.eq.s32.totalorder %s17, 0
      %p147 = por %p145, %p146
      %p148 = scmp.ne.s32.totalorder %s137, %s140
      %p149 = scmp.eq.s32.totalorder %s22, 1
      %p150 = por %p148, %p149
      %p151 = scmp.ne.s32.totalorder %s140, %s141
      %p152 = scmp.eq.s32.totalorder %s22, 0
      %p153 = por %p151, %p152
      %p154 = scmp.ne.s32.totalorder %s140, %s141
      %p155 = scmp.eq.s32.totalorder %s23, 1
      %p156 = por %p154, %p155
      %p158 = scmp.ne.s32.totalorder %s141, %s157
      %p159 = scmp.eq.s32.totalorder %s23, 0
      %p160 = por %p158, %p159
      %p161 = scmp.le.s32.totalorder 1, %s17
      %p162 = scmp.lt.s32.totalorder %s17, 3
      %p163 = pnand %p161, %p162
      %p164 = pneg %p163
      // Predicated region
      $region9: #{tpu_custom_call.1} parent=5 // pred_check
        _
      $region10: #{tpu_custom_call.1} parent=5 // pred_check_branch
        %166 = sbr.rel (%p163) target = $region12
      $region11: #{tpu_custom_call.1} parent=5 // pred_region
        %s167 = ssub.s32 %s17, 1
        // Predicated region
        $region13: #{tpu_custom_call.1} parent=11 // pred_check
          %p168 = pneg %p76
        $region14: #{tpu_custom_call.1} parent=11 // pred_check_branch
          %170 = sbr.rel (%p168) target = $region16
        $region15: #{tpu_custom_call.1} parent=11 // pred_region
          _
        $region16: #{tpu_custom_call.1} parent=11 // pred_fallthru
          _
        // Predicated region
        $region17: #{tpu_custom_call.1} parent=11 // pred_check
          %p171 = pneg %p97
        $region18: #{tpu_custom_call.1} parent=11 // pred_check_branch
          %173 = sbr.rel (%p171) target = $region20
        $region19: #{tpu_custom_call.1} parent=11 // pred_region
          _
        $region20: #{tpu_custom_call.1} parent=11 // pred_fallthru
          _
      $region12: #{tpu_custom_call.1} parent=5 // pred_fallthru
        _
      %p174 = scmp.lt.s32.totalorder %s17, 2
      // Predicated region
      $region21: #{tpu_custom_call.1} parent=5 // pred_check
        %p175 = pneg %p174
      $region22: #{tpu_custom_call.1} parent=5 // pred_check_branch
        %177 = sbr.rel (%p175) target = $region24
      $region23: #{tpu_custom_call.1} parent=5 // pred_region
        // Predicated region
        $region25: #{tpu_custom_call.1} parent=23 // pred_check
          %p178 = pneg %p49
        $region26: #{tpu_custom_call.1} parent=23 // pred_check_branch
          %180 = sbr.rel (%p178) target = $region28
        $region27: #{tpu_custom_call.1} parent=23 // pred_region
          %p181 = scmp.lt.s32.totalorder %s24, 1
          %s182 = scalar_select %p181, %s24, 1
          %s183 = smul.addr %s182, 54
          %s184 = smul.addr %s183, 4
          %s185 = scalar_lea.vmem %s0, %s184
        $region28: #{tpu_custom_call.1} parent=23 // pred_fallthru
          _
      $region24: #{tpu_custom_call.1} parent=5 // pred_fallthru
        _
      %p186 = scmp.le.s32.totalorder 1, %s17
      %p187 = scmp.lt.s32.totalorder %s17, 3
      %p188 = pnand %p186, %p187
      %p189 = pneg %p188
      // Predicated region
      $region29: #{tpu_custom_call.1} parent=5 // pred_check
        _
      $region30: #{tpu_custom_call.1} parent=5 // pred_check_branch
        %191 = sbr.rel (%p188) target = $region32
      $region31: #{tpu_custom_call.1} parent=5 // pred_region
        %s192 = ssub.s32 %s17, 1
        %p193 = scmp.lt.s32.totalorder %s26, 1
        %s194 = scalar_select %p193, %s26, 1
        %s195 = smul.addr %s194, 54
        %s196 = smul.addr %s195, 4
        %s197 = scalar_lea.vmem %s0, %s196
        %p198 = pneg %p55
        %p199 = pneg %p52
        %p200 = pneg %p76
        %p201 = pneg %p73
        %p202 = pneg %p97
        %p203 = pneg %p94
        %p204 = pneg %p125
        %p205 = pneg %p122
        %s206 = sand.u32 %s112, 1
        %s207 = scalar_lea.sflag [#allocation3], %s206
        %s208 = sand.u32 %s112, 1
        %s209 = smul.addr %s208, 128
        %s210 = scalar_lea.vmem [#allocation2], %s209
        %p211 = pneg %p153
        %p212 = pneg %p150
        %s213 = sand.u32 %s140, 1
        %s214 = scalar_lea.sflag [#allocation5], %s213
        %s215 = sand.u32 %s140, 1
        %s216 = smul.addr %s215, 2
        %s217 = scalar_lea.vmem [#allocation4], %s216
        %p218 = scmp.lt.s32.totalorder %s26, 1
        %s219 = scalar_select %p218, %s26, 1
        %s220 = smul.addr %s219, 54
        %s221 = smul.addr %s220, 4
        %s222 = scalar_lea.vmem %s0, %s221
        %s223 = smul.u32 32, %s27
        %s225 = smul.u32 %s27, 16
        %s226 = smul.u32 %s225, 3
        %s227 = smul.addr %s226, 4
        %s228 = scalar_lea.vmem %s222, %s227
        %v229 = vld [vmem:[%s228] sm:$0xf]
        %v230 = vld [vmem:[%s228 + $0x4] sm:$0xf]
        %v231 = vld [vmem:[%s228 + $0x8] sm:$0x1]
        %v232 = vld [vmem:[%s228 + $0xc] sm:$0xf]
        %v233 = vld [vmem:[%s228 + $0x10] sm:$0xf]
        %v234 = vld [vmem:[%s228 + $0x14] sm:$0x1]
        %v235 = vld [vmem:[%s228 + $0x18] sm:$0xf]
        %v236 = vld [vmem:[%s228 + $0x1c] sm:$0xf]
        %v237 = vld [vmem:[%s228 + $0x20] sm:$0x1]
        %v238 = vld [vmem:[%s228 + $0x24] sm:$0xf]
        %v239 = vld [vmem:[%s228 + $0x28] sm:$0xf]
        %v240 = vld [vmem:[%s228 + $0x2c] sm:$0x1]
        %v241 = vld [vmem:[%s228 + $0x30] sm:$0xf]
        %v242 = vld [vmem:[%s228 + $0x34] sm:$0xf]
        %v243 = vld [vmem:[%s228 + $0x38] sm:$0x1]
        %v244 = vld [vmem:[%s228 + $0x3c] sm:$0xf]
        %v245 = vld [vmem:[%s228 + $0x40] sm:$0xf]
        %v246 = vld [vmem:[%s228 + $0x44] sm:$0x1]
        %v247 = vld [vmem:[%s228 + $0x48] sm:$0xf]
        %v248 = vld [vmem:[%s228 + $0x4c] sm:$0xf]
        %v249 = vld [vmem:[%s228 + $0x50] sm:$0x1]
        %v250 = vld [vmem:[%s228 + $0x54] sm:$0xf]
        %v251 = vld [vmem:[%s228 + $0x58] sm:$0xf]
        %v252 = vld [vmem:[%s228 + $0x5c] sm:$0x1]
        %v253 = vld [vmem:[%s228 + $0x60] sm:$0xf]
        %v254 = vld [vmem:[%s228 + $0x64] sm:$0xf]
        %v255 = vld [vmem:[%s228 + $0x68] sm:$0x1]
        %v256 = vld [vmem:[%s228 + $0x6c] sm:$0xf]
        %v257 = vld [vmem:[%s228 + $0x70] sm:$0xf]
        %v258 = vld [vmem:[%s228 + $0x74] sm:$0x1]
        %v259 = vld [vmem:[%s228 + $0x78] sm:$0xf]
        %v260 = vld [vmem:[%s228 + $0x7c] sm:$0xf]
        %v261 = vld [vmem:[%s228 + $0x80] sm:$0x1]
        %v262 = vld [vmem:[%s228 + $0x84] sm:$0xf]
        %v263 = vld [vmem:[%s228 + $0x88] sm:$0xf]
        %v264 = vld [vmem:[%s228 + $0x8c] sm:$0x1]
        %v265 = vld [vmem:[%s228 + $0x90] sm:$0xf]
        %v266 = vld [vmem:[%s228 + $0x94] sm:$0xf]
        %v267 = vld [vmem:[%s228 + $0x98] sm:$0x1]
        %v268 = vld [vmem:[%s228 + $0x9c] sm:$0xf]
        %v269 = vld [vmem:[%s228 + $0xa0] sm:$0xf]
        %v270 = vld [vmem:[%s228 + $0xa4] sm:$0x1]
        %v271 = vld [vmem:[%s228 + $0xa8] sm:$0xf]
        %v272 = vld [vmem:[%s228 + $0xac] sm:$0xf]
        %v273 = vld [vmem:[%s228 + $0xb0] sm:$0x1]
        %v274 = vld [vmem:[%s228 + $0xb4] sm:$0xf]
        %v275 = vld [vmem:[%s228 + $0xb8] sm:$0xf]
        %v276 = vld [vmem:[%s228 + $0xbc] sm:$0x1]
        %v277 = vld [vmem:[%s228 + $0xc0] sm:$0xf]
        %v278 = vld [vmem:[%s228 + $0xc4] sm:$0xf]
        %v279 = vld [vmem:[%s228 + $0xc8] sm:$0x1]
        %v280 = vld [vmem:[%s228 + $0xcc] sm:$0xf]
        %v281 = vld [vmem:[%s228 + $0xd0] sm:$0xf]
        %v282 = vld [vmem:[%s228 + $0xd4] sm:$0x1]
        %v315 = vunpack.c.l.b16 %v229
        %v316 = vunpack.c.l.b16 %v230
        %v317 = vunpack.c.l.b16 %v232
        %v318 = vunpack.c.l.b16 %v233
        %v319 = vunpack.c.l.b16 %v235
        %v320 = vunpack.c.l.b16 %v236
        %v321 = vunpack.c.l.b16 %v238
        %v322 = vunpack.c.l.b16 %v239
        %v323 = vunpack.c.l.b16 %v241
        %v324 = vunpack.c.l.b16 %v242
        %v325 = vunpack.c.l.b16 %v244
        %v326 = vunpack.c.l.b16 %v245
        %v327 = vunpack.c.l.b16 %v247
        %v328 = vunpack.c.l.b16 %v248
        %v329 = vunpack.c.l.b16 %v250
        %v330 = vunpack.c.l.b16 %v251
        %v331 = vunpack.c.l.b16 %v253
        %v332 = vunpack.c.l.b16 %v254
        %v333 = vunpack.c.l.b16 %v256
        %v334 = vunpack.c.l.b16 %v257
        %v335 = vunpack.c.l.b16 %v259
        %v336 = vunpack.c.l.b16 %v260
        %v337 = vunpack.c.l.b16 %v262
        %v338 = vunpack.c.l.b16 %v263
        %v339 = vunpack.c.l.b16 %v265
        %v340 = vunpack.c.l.b16 %v266
        %v341 = vunpack.c.l.b16 %v268
        %v342 = vunpack.c.l.b16 %v269
        %v343 = vunpack.c.l.b16 %v271
        %v344 = vunpack.c.l.b16 %v272
        %v345 = vunpack.c.l.b16 %v274
        %v346 = vunpack.c.l.b16 %v275
        %v347 = vpack.c.b16 %v316, %v315
        %v348 = vpack.c.b16 %v318, %v317
        %v349 = vpack.c.b16 %v320, %v319
        %v350 = vpack.c.b16 %v322, %v321
        %v351 = vpack.c.b16 %v324, %v323
        %v352 = vpack.c.b16 %v326, %v325
        %v353 = vpack.c.b16 %v328, %v327
        %v354 = vpack.c.b16 %v330, %v329
        %v355 = vpack.c.b16 %v332, %v331
        %v356 = vpack.c.b16 %v334, %v333
        %v357 = vpack.c.b16 %v336, %v335
        %v358 = vpack.c.b16 %v338, %v337
        %v359 = vpack.c.b16 %v340, %v339
        %v360 = vpack.c.b16 %v342, %v341
        %v361 = vpack.c.b16 %v344, %v343
        %v362 = vpack.c.b16 %v346, %v345
        %v379 = vunpack.c.l.b16 %v231
        %v380 = vunpack.c.l.b16 %v234
        %v381 = vunpack.c.l.b16 %v237
        %v382 = vunpack.c.l.b16 %v240
        %v383 = vunpack.c.l.b16 %v243
        %v384 = vunpack.c.l.b16 %v246
        %v385 = vunpack.c.l.b16 %v249
        %v386 = vunpack.c.l.b16 %v252
        %v387 = vunpack.c.l.b16 %v255
        %v388 = vunpack.c.l.b16 %v258
        %v389 = vunpack.c.l.b16 %v261
        %v390 = vunpack.c.l.b16 %v264
        %v391 = vunpack.c.l.b16 %v267
        %v392 = vunpack.c.l.b16 %v270
        %v393 = vunpack.c.l.b16 %v273
        %v394 = vunpack.c.l.b16 %v276
        %v395 = vpack.c.b16 %v379, %v379
        %v396 = vpack.c.b16 %v380, %v380
        %v397 = vpack.c.b16 %v381, %v381
        %v398 = vpack.c.b16 %v382, %v382
        %v399 = vpack.c.b16 %v383, %v383
        %v400 = vpack.c.b16 %v384, %v384
        %v401 = vpack.c.b16 %v385, %v385
        %v402 = vpack.c.b16 %v386, %v386
        %v403 = vpack.c.b16 %v387, %v387
        %v404 = vpack.c.b16 %v388, %v388
        %v405 = vpack.c.b16 %v389, %v389
        %v406 = vpack.c.b16 %v390, %v390
        %v407 = vpack.c.b16 %v391, %v391
        %v408 = vpack.c.b16 %v392, %v392
        %v409 = vpack.c.b16 %v393, %v393
        %v410 = vpack.c.b16 %v394, %v394
        %vm411 = vsmask.f32 7424
        %v413 = vshrl.u32 %v347, 16
        %v415 = vshll.u32 %v347, 16
        %v417 = vrot.slane %v415, 1
        %v418 = vor.u32 %v413, %v417
        %v420 = vshll.u32 %v395, 16
        %v422 = vrot.slane %v420, 1
        %v423 = vsel %vm411, %v418, %v422
        %v425 = vshrl.u32 %v348, 16
        %v427 = vshll.u32 %v348, 16
        %v429 = vrot.slane %v427, 1
        %v430 = vor.u32 %v425, %v429
        %v432 = vshll.u32 %v396, 16
        %v434 = vrot.slane %v432, 1
        %v435 = vsel %vm411, %v430, %v434
        %v437 = vshrl.u32 %v349, 16
        %v439 = vshll.u32 %v349, 16
        %v441 = vrot.slane %v439, 1
        %v442 = vor.u32 %v437, %v441
        %v444 = vshll.u32 %v397, 16
        %v446 = vrot.slane %v444, 1
        %v447 = vsel %vm411, %v442, %v446
        %v449 = vshrl.u32 %v350, 16
        %v451 = vshll.u32 %v350, 16
        %v453 = vrot.slane %v451, 1
        %v454 = vor.u32 %v449, %v453
        %v456 = vshll.u32 %v398, 16
        %v458 = vrot.slane %v456, 1
        %v459 = vsel %vm411, %v454, %v458
        %v461 = vshrl.u32 %v351, 16
        %v463 = vshll.u32 %v351, 16
        %v465 = vrot.slane %v463, 1
        %v466 = vor.u32 %v461, %v465
        %v468 = vshll.u32 %v399, 16
        %v470 = vrot.slane %v468, 1
        %v471 = vsel %vm411, %v466, %v470
        %v473 = vshrl.u32 %v352, 16
        %v475 = vshll.u32 %v352, 16
        %v477 = vrot.slane %v475, 1
        %v478 = vor.u32 %v473, %v477
        %v480 = vshll.u32 %v400, 16
        %v482 = vrot.slane %v480, 1
        %v483 = vsel %vm411, %v478, %v482
        %v485 = vshrl.u32 %v353, 16
        %v487 = vshll.u32 %v353, 16
        %v489 = vrot.slane %v487, 1
        %v490 = vor.u32 %v485, %v489
        %v492 = vshll.u32 %v401, 16
        %v494 = vrot.slane %v492, 1
        %v495 = vsel %vm411, %v490, %v494
        %v497 = vshrl.u32 %v354, 16
        %v499 = vshll.u32 %v354, 16
        %v501 = vrot.slane %v499, 1
        %v502 = vor.u32 %v497, %v501
        %v504 = vshll.u32 %v402, 16
        %v506 = vrot.slane %v504, 1
        %v507 = vsel %vm411, %v502, %v506
        %v509 = vshrl.u32 %v355, 16
        %v511 = vshll.u32 %v355, 16
        %v513 = vrot.slane %v511, 1
        %v514 = vor.u32 %v509, %v513
        %v516 = vshll.u32 %v403, 16
        %v518 = vrot.slane %v516, 1
        %v519 = vsel %vm411, %v514, %v518
        %v521 = vshrl.u32 %v356, 16
        %v523 = vshll.u32 %v356, 16
        %v525 = vrot.slane %v523, 1
        %v526 = vor.u32 %v521, %v525
        %v528 = vshll.u32 %v404, 16
        %v530 = vrot.slane %v528, 1
        %v531 = vsel %vm411, %v526, %v530
        %v533 = vshrl.u32 %v357, 16
        %v535 = vshll.u32 %v357, 16
        %v537 = vrot.slane %v535, 1
        %v538 = vor.u32 %v533, %v537
        %v540 = vshll.u32 %v405, 16
        %v542 = vrot.slane %v540, 1
        %v543 = vsel %vm411, %v538, %v542
        %v545 = vshrl.u32 %v358, 16
        %v547 = vshll.u32 %v358, 16
        %v549 = vrot.slane %v547, 1
        %v550 = vor.u32 %v545, %v549
        %v552 = vshll.u32 %v406, 16
        %v554 = vrot.slane %v552, 1
        %v555 = vsel %vm411, %v550, %v554
        %v557 = vshrl.u32 %v359, 16
        %v559 = vshll.u32 %v359, 16
        %v561 = vrot.slane %v559, 1
        %v562 = vor.u32 %v557, %v561
        %v564 = vshll.u32 %v407, 16
        %v566 = vrot.slane %v564, 1
        %v567 = vsel %vm411, %v562, %v566
        %v569 = vshrl.u32 %v360, 16
        %v571 = vshll.u32 %v360, 16
        %v573 = vrot.slane %v571, 1
        %v574 = vor.u32 %v569, %v573
        %v576 = vshll.u32 %v408, 16
        %v578 = vrot.slane %v576, 1
        %v579 = vsel %vm411, %v574, %v578
        %v581 = vshrl.u32 %v361, 16
        %v583 = vshll.u32 %v361, 16
        %v585 = vrot.slane %v583, 1
        %v586 = vor.u32 %v581, %v585
        %v588 = vshll.u32 %v409, 16
        %v590 = vrot.slane %v588, 1
        %v591 = vsel %vm411, %v586, %v590
        %v593 = vshrl.u32 %v362, 16
        %v595 = vshll.u32 %v362, 16
        %v597 = vrot.slane %v595, 1
        %v598 = vor.u32 %v593, %v597
        %v600 = vshll.u32 %v410, 16
        %v602 = vrot.slane %v600, 1
        %v603 = vsel %vm411, %v598, %v602
        %604 = vrot.lane.b32.xlu0 %v423, 4
        %v605 = vpop.permute.xlu0 %604
        %606 = vrot.lane.b32.xlu0 %v435, 4
        %v607 = vpop.permute.xlu0 %606
        %608 = vrot.lane.b32.xlu0 %v447, 4
        %v609 = vpop.permute.xlu0 %608
        %610 = vrot.lane.b32.xlu0 %v459, 4
        %v611 = vpop.permute.xlu0 %610
        %612 = vrot.lane.b32.xlu0 %v471, 4
        %v613 = vpop.permute.xlu0 %612
        %614 = vrot.lane.b32.xlu0 %v483, 4
        %v615 = vpop.permute.xlu0 %614
        %616 = vrot.lane.b32.xlu0 %v495, 4
        %v617 = vpop.permute.xlu0 %616
        %618 = vrot.lane.b32.xlu0 %v507, 4
        %v619 = vpop.permute.xlu0 %618
        %620 = vrot.lane.b32.xlu0 %v519, 4
        %v621 = vpop.permute.xlu0 %620
        %622 = vrot.lane.b32.xlu0 %v531, 4
        %v623 = vpop.permute.xlu0 %622
        %624 = vrot.lane.b32.xlu0 %v543, 4
        %v625 = vpop.permute.xlu0 %624
        %626 = vrot.lane.b32.xlu0 %v555, 4
        %v627 = vpop.permute.xlu0 %626
        %628 = vrot.lane.b32.xlu0 %v567, 4
        %v629 = vpop.permute.xlu0 %628
        %630 = vrot.lane.b32.xlu0 %v579, 4
        %v631 = vpop.permute.xlu0 %630
        %632 = vrot.lane.b32.xlu0 %v591, 4
        %v633 = vpop.permute.xlu0 %632
        %634 = vrot.lane.b32.xlu0 %v603, 4
        %v635 = vpop.permute.xlu0 %634
        %vm636 = vcmask 1046528
        %v637 = vrot.slane %v347, 1
        %v638 = vrot.slane %v395, 1
        %v639 = vsel %vm636, %v637, %v638
        %v640 = vrot.slane %v348, 1
        %v641 = vrot.slane %v396, 1
        %v642 = vsel %vm636, %v640, %v641
        %v643 = vrot.slane %v349, 1
        %v644 = vrot.slane %v397, 1
        %v645 = vsel %vm636, %v643, %v644
        %v646 = vrot.slane %v350, 1
        %v647 = vrot.slane %v398, 1
        %v648 = vsel %vm636, %v646, %v647
        %v649 = vrot.slane %v351, 1
        %v650 = vrot.slane %v399, 1
        %v651 = vsel %vm636, %v649, %v650
        %v652 = vrot.slane %v352, 1
        %v653 = vrot.slane %v400, 1
        %v654 = vsel %vm636, %v652, %v653
        %v655 = vrot.slane %v353, 1
        %v656 = vrot.slane %v401, 1
        %v657 = vsel %vm636, %v655, %v656
        %v658 = vrot.slane %v354, 1
        %v659 = vrot.slane %v402, 1
        %v660 = vsel %vm636, %v658, %v659
        %v661 = vrot.slane %v355, 1
        %v662 = vrot.slane %v403, 1
        %v663 = vsel %vm636, %v661, %v662
        %v664 = vrot.slane %v356, 1
        %v665 = vrot.slane %v404, 1
        %v666 = vsel %vm636, %v664, %v665
        %v667 = vrot.slane %v357, 1
        %v668 = vrot.slane %v405, 1
        %v669 = vsel %vm636, %v667, %v668
        %v670 = vrot.slane %v358, 1
        %v671 = vrot.slane %v406, 1
        %v672 = vsel %vm636, %v670, %v671
        %v673 = vrot.slane %v359, 1
        %v674 = vrot.slane %v407, 1
        %v675 = vsel %vm636, %v673, %v674
        %v676 = vrot.slane %v360, 1
        %v677 = vrot.slane %v408, 1
        %v678 = vsel %vm636, %v676, %v677
        %v679 = vrot.slane %v361, 1
        %v680 = vrot.slane %v409, 1
        %v681 = vsel %vm636, %v679, %v680
        %v682 = vrot.slane %v362, 1
        %v683 = vrot.slane %v410, 1
        %v684 = vsel %vm636, %v682, %v683
        %685 = vrot.lane.b32.xlu0 %v639, 8
        %v686 = vpop.permute.xlu0 %685
        %687 = vrot.lane.b32.xlu0 %v642, 8
        %v688 = vpop.permute.xlu0 %687
        %689 = vrot.lane.b32.xlu0 %v645, 8
        %v690 = vpop.permute.xlu0 %689
        %691 = vrot.lane.b32.xlu0 %v648, 8
        %v692 = vpop.permute.xlu0 %691
        %693 = vrot.lane.b32.xlu0 %v651, 8
        %v694 = vpop.permute.xlu0 %693
        %695 = vrot.lane.b32.xlu0 %v654, 8
        %v696 = vpop.permute.xlu0 %695
        %697 = vrot.lane.b32.xlu0 %v657, 8
        %v698 = vpop.permute.xlu0 %697
        %699 = vrot.lane.b32.xlu0 %v660, 8
        %v700 = vpop.permute.xlu0 %699
        %701 = vrot.lane.b32.xlu0 %v663, 8
        %v702 = vpop.permute.xlu0 %701
        %703 = vrot.lane.b32.xlu0 %v666, 8
        %v704 = vpop.permute.xlu0 %703
        %705 = vrot.lane.b32.xlu0 %v669, 8
        %v706 = vpop.permute.xlu0 %705
        %707 = vrot.lane.b32.xlu0 %v672, 8
        %v708 = vpop.permute.xlu0 %707
        %709 = vrot.lane.b32.xlu0 %v675, 8
        %v710 = vpop.permute.xlu0 %709
        %711 = vrot.lane.b32.xlu0 %v678, 8
        %v712 = vpop.permute.xlu0 %711
        %713 = vrot.lane.b32.xlu0 %v681, 8
        %v714 = vpop.permute.xlu0 %713
        %715 = vrot.lane.b32.xlu0 %v684, 8
        %v716 = vpop.permute.xlu0 %715
        %v719 = vunpack.c.l.b16 %v277
        %v720 = vunpack.c.l.b16 %v278
        %v721 = vpack.c.b16 %v720, %v719
        %722 = vrot.lane.b32.xlu0 %v348, 12
        %v723 = vpop.permute.xlu0 %722
        %724 = vrot.lane.b32.xlu0 %v349, 12
        %v725 = vpop.permute.xlu0 %724
        %726 = vrot.lane.b32.xlu0 %v350, 12
        %v727 = vpop.permute.xlu0 %726
        %728 = vrot.lane.b32.xlu0 %v351, 12
        %v729 = vpop.permute.xlu0 %728
        %730 = vrot.lane.b32.xlu0 %v352, 12
        %v731 = vpop.permute.xlu0 %730
        %732 = vrot.lane.b32.xlu0 %v353, 12
        %v733 = vpop.permute.xlu0 %732
        %734 = vrot.lane.b32.xlu0 %v354, 12
        %v735 = vpop.permute.xlu0 %734
        %736 = vrot.lane.b32.xlu0 %v355, 12
        %v737 = vpop.permute.xlu0 %736
        %738 = vrot.lane.b32.xlu0 %v356, 12
        %v739 = vpop.permute.xlu0 %738
        %740 = vrot.lane.b32.xlu0 %v357, 12
        %v741 = vpop.permute.xlu0 %740
        %742 = vrot.lane.b32.xlu0 %v358, 12
        %v743 = vpop.permute.xlu0 %742
        %744 = vrot.lane.b32.xlu0 %v359, 12
        %v745 = vpop.permute.xlu0 %744
        %746 = vrot.lane.b32.xlu0 %v360, 12
        %v747 = vpop.permute.xlu0 %746
        %748 = vrot.lane.b32.xlu0 %v361, 12
        %v749 = vpop.permute.xlu0 %748
        %750 = vrot.lane.b32.xlu0 %v362, 12
        %v751 = vpop.permute.xlu0 %750
        %752 = vrot.lane.b32.xlu0 %v721, 12
        %v753 = vpop.permute.xlu0 %752
        %v755 = vunpack.c.l.b16 %v279
        %v756 = vpack.c.b16 %v755, %v755
        %v758 = vshrl.u32 %v721, 16
        %v760 = vshll.u32 %v721, 16
        %v762 = vrot.slane %v760, 1
        %v763 = vor.u32 %v758, %v762
        %v765 = vshll.u32 %v756, 16
        %v767 = vrot.slane %v765, 1
        %v768 = vsel %vm411, %v763, %v767
        %769 = vrot.lane.b32.xlu0 %v435, 16
        %v770 = vpop.permute.xlu0 %769
        %771 = vrot.lane.b32.xlu0 %v447, 16
        %v772 = vpop.permute.xlu0 %771
        %773 = vrot.lane.b32.xlu0 %v459, 16
        %v774 = vpop.permute.xlu0 %773
        %775 = vrot.lane.b32.xlu0 %v471, 16
        %v776 = vpop.permute.xlu0 %775
        %777 = vrot.lane.b32.xlu0 %v483, 16
        %v778 = vpop.permute.xlu0 %777
        %779 = vrot.lane.b32.xlu0 %v495, 16
        %v780 = vpop.permute.xlu0 %779
        %781 = vrot.lane.b32.xlu0 %v507, 16
        %v782 = vpop.permute.xlu0 %781
        %783 = vrot.lane.b32.xlu0 %v519, 16
        %v784 = vpop.permute.xlu0 %783
        %785 = vrot.lane.b32.xlu0 %v531, 16
        %v786 = vpop.permute.xlu0 %785
        %787 = vrot.lane.b32.xlu0 %v543, 16
        %v788 = vpop.permute.xlu0 %787
        %789 = vrot.lane.b32.xlu0 %v555, 16
        %v790 = vpop.permute.xlu0 %789
        %791 = vrot.lane.b32.xlu0 %v567, 16
        %v792 = vpop.permute.xlu0 %791
        %793 = vrot.lane.b32.xlu0 %v579, 16
        %v794 = vpop.permute.xlu0 %793
        %795 = vrot.lane.b32.xlu0 %v591, 16
        %v796 = vpop.permute.xlu0 %795
        %797 = vrot.lane.b32.xlu0 %v603, 16
        %v798 = vpop.permute.xlu0 %797
        %799 = vrot.lane.b32.xlu0 %v768, 16
        %v800 = vpop.permute.xlu0 %799
        %v801 = vrot.slane %v721, 1
        %v802 = vrot.slane %v756, 1
        %v803 = vsel %vm636, %v801, %v802
        %804 = vrot.lane.b32.xlu0 %v642, 20
        %v805 = vpop.permute.xlu0 %804
        %806 = vrot.lane.b32.xlu0 %v645, 20
        %v807 = vpop.permute.xlu0 %806
        %808 = vrot.lane.b32.xlu0 %v648, 20
        %v809 = vpop.permute.xlu0 %808
        %810 = vrot.lane.b32.xlu0 %v651, 20
        %v811 = vpop.permute.xlu0 %810
        %812 = vrot.lane.b32.xlu0 %v654, 20
        %v813 = vpop.permute.xlu0 %812
        %814 = vrot.lane.b32.xlu0 %v657, 20
        %v815 = vpop.permute.xlu0 %814
        %816 = vrot.lane.b32.xlu0 %v660, 20
        %v817 = vpop.permute.xlu0 %816
        %818 = vrot.lane.b32.xlu0 %v663, 20
        %v819 = vpop.permute.xlu0 %818
        %820 = vrot.lane.b32.xlu0 %v666, 20
        %v821 = vpop.permute.xlu0 %820
        %822 = vrot.lane.b32.xlu0 %v669, 20
        %v823 = vpop.permute.xlu0 %822
        %824 = vrot.lane.b32.xlu0 %v672, 20
        %v825 = vpop.permute.xlu0 %824
        %826 = vrot.lane.b32.xlu0 %v675, 20
        %v827 = vpop.permute.xlu0 %826
        %828 = vrot.lane.b32.xlu0 %v678, 20
        %v829 = vpop.permute.xlu0 %828
        %830 = vrot.lane.b32.xlu0 %v681, 20
        %v831 = vpop.permute.xlu0 %830
        %832 = vrot.lane.b32.xlu0 %v684, 20
        %v833 = vpop.permute.xlu0 %832
        %834 = vrot.lane.b32.xlu0 %v803, 20
        %v835 = vpop.permute.xlu0 %834
        %v838 = vunpack.c.l.b16 %v280
        %v839 = vunpack.c.l.b16 %v281
        %v840 = vpack.c.b16 %v839, %v838
        %841 = vrot.lane.b32.xlu0 %v349, 24
        %v842 = vpop.permute.xlu0 %841
        %843 = vrot.lane.b32.xlu0 %v350, 24
        %v844 = vpop.permute.xlu0 %843
        %845 = vrot.lane.b32.xlu0 %v351, 24
        %v846 = vpop.permute.xlu0 %845
        %847 = vrot.lane.b32.xlu0 %v352, 24
        %v848 = vpop.permute.xlu0 %847
        %849 = vrot.lane.b32.xlu0 %v353, 24
        %v850 = vpop.permute.xlu0 %849
        %851 = vrot.lane.b32.xlu0 %v354, 24
        %v852 = vpop.permute.xlu0 %851
        %853 = vrot.lane.b32.xlu0 %v355, 24
        %v854 = vpop.permute.xlu0 %853
        %855 = vrot.lane.b32.xlu0 %v356, 24
        %v856 = vpop.permute.xlu0 %855
        %857 = vrot.lane.b32.xlu0 %v357, 24
        %v858 = vpop.permute.xlu0 %857
        %859 = vrot.lane.b32.xlu0 %v358, 24
        %v860 = vpop.permute.xlu0 %859
        %861 = vrot.lane.b32.xlu0 %v359, 24
        %v862 = vpop.permute.xlu0 %861
        %863 = vrot.lane.b32.xlu0 %v360, 24
        %v864 = vpop.permute.xlu0 %863
        %865 = vrot.lane.b32.xlu0 %v361, 24
        %v866 = vpop.permute.xlu0 %865
        %867 = vrot.lane.b32.xlu0 %v362, 24
        %v868 = vpop.permute.xlu0 %867
        %869 = vrot.lane.b32.xlu0 %v721, 24
        %v870 = vpop.permute.xlu0 %869
        %871 = vrot.lane.b32.xlu0 %v840, 24
        %v872 = vpop.permute.xlu0 %871
        %v874 = vunpack.c.l.b16 %v282
        %v875 = vpack.c.b16 %v874, %v874
        %v877 = vshrl.u32 %v840, 16
        %v879 = vshll.u32 %v840, 16
        %v881 = vrot.slane %v879, 1
        %v882 = vor.u32 %v877, %v881
        %v884 = vshll.u32 %v875, 16
        %v886 = vrot.slane %v884, 1
        %v887 = vsel %vm411, %v882, %v886
        %888 = vrot.lane.b32.xlu0 %v447, 28
        %v889 = vpop.permute.xlu0 %888
        %890 = vrot.lane.b32.xlu0 %v459, 28
        %v891 = vpop.permute.xlu0 %890
        %892 = vrot.lane.b32.xlu0 %v471, 28
        %v893 = vpop.permute.xlu0 %892
        %894 = vrot.lane.b32.xlu0 %v483, 28
        %v895 = vpop.permute.xlu0 %894
        %896 = vrot.lane.b32.xlu0 %v495, 28
        %v897 = vpop.permute.xlu0 %896
        %898 = vrot.lane.b32.xlu0 %v507, 28
        %v899 = vpop.permute.xlu0 %898
        %900 = vrot.lane.b32.xlu0 %v519, 28
        %v901 = vpop.permute.xlu0 %900
        %902 = vrot.lane.b32.xlu0 %v531, 28
        %v903 = vpop.permute.xlu0 %902
        %904 = vrot.lane.b32.xlu0 %v543, 28
        %v905 = vpop.permute.xlu0 %904
        %906 = vrot.lane.b32.xlu0 %v555, 28
        %v907 = vpop.permute.xlu0 %906
        %908 = vrot.lane.b32.xlu0 %v567, 28
        %v909 = vpop.permute.xlu0 %908
        %910 = vrot.lane.b32.xlu0 %v579, 28
        %v911 = vpop.permute.xlu0 %910
        %912 = vrot.lane.b32.xlu0 %v591, 28
        %v913 = vpop.permute.xlu0 %912
        %914 = vrot.lane.b32.xlu0 %v603, 28
        %v915 = vpop.permute.xlu0 %914
        %916 = vrot.lane.b32.xlu0 %v768, 28
        %v917 = vpop.permute.xlu0 %916
        %918 = vrot.lane.b32.xlu0 %v887, 28
        %v919 = vpop.permute.xlu0 %918
        %v920 = vrot.slane %v840, 1
        %v921 = vrot.slane %v875, 1
        %v922 = vsel %vm636, %v920, %v921
        %923 = vrot.lane.b32.xlu0 %v645, 32
        %v924 = vpop.permute.xlu0 %923
        %925 = vrot.lane.b32.xlu0 %v648, 32
        %v926 = vpop.permute.xlu0 %925
        %927 = vrot.lane.b32.xlu0 %v651, 32
        %v928 = vpop.permute.xlu0 %927
        %929 = vrot.lane.b32.xlu0 %v654, 32
        %v930 = vpop.permute.xlu0 %929
        %931 = vrot.lane.b32.xlu0 %v657, 32
        %v932 = vpop.permute.xlu0 %931
        %933 = vrot.lane.b32.xlu0 %v660, 32
        %v934 = vpop.permute.xlu0 %933
        %935 = vrot.lane.b32.xlu0 %v663, 32
        %v936 = vpop.permute.xlu0 %935
        %937 = vrot.lane.b32.xlu0 %v666, 32
        %v938 = vpop.permute.xlu0 %937
        %939 = vrot.lane.b32.xlu0 %v669, 32
        %v940 = vpop.permute.xlu0 %939
        %941 = vrot.lane.b32.xlu0 %v672, 32
        %v942 = vpop.permute.xlu0 %941
        %943 = vrot.lane.b32.xlu0 %v675, 32
        %v944 = vpop.permute.xlu0 %943
        %945 = vrot.lane.b32.xlu0 %v678, 32
        %v946 = vpop.permute.xlu0 %945
        %947 = vrot.lane.b32.xlu0 %v681, 32
        %v948 = vpop.permute.xlu0 %947
        %949 = vrot.lane.b32.xlu0 %v684, 32
        %v950 = vpop.permute.xlu0 %949
        %951 = vrot.lane.b32.xlu0 %v803, 32
        %v952 = vpop.permute.xlu0 %951
        %953 = vrot.lane.b32.xlu0 %v922, 32
        %v954 = vpop.permute.xlu0 %953
        %vm955 = vcmask 31744
        %v957 = vsel %vm955, %v347, %v605
        %v959 = vsel %vm955, %v348, %v607
        %v961 = vsel %vm955, %v349, %v609
        %v963 = vsel %vm955, %v350, %v611
        %v965 = vsel %vm955, %v351, %v613
        %v967 = vsel %vm955, %v352, %v615
        %v969 = vsel %vm955, %v353, %v617
        %v971 = vsel %vm955, %v354, %v619
        %v973 = vsel %vm955, %v355, %v621
        %v975 = vsel %vm955, %v356, %v623
        %v977 = vsel %vm955, %v357, %v625
        %v979 = vsel %vm955, %v358, %v627
        %v981 = vsel %vm955, %v359, %v629
        %v983 = vsel %vm955, %v360, %v631
        %v985 = vsel %vm955, %v361, %v633
        %v987 = vsel %vm955, %v362, %v635
        %vm988 = vcmask 64512
        %v990 = vsel %vm988, %v957, %v686
        %v992 = vsel %vm988, %v959, %v688
        %v994 = vsel %vm988, %v961, %v690
        %v996 = vsel %vm988, %v963, %v692
        %v998 = vsel %vm988, %v965, %v694
        %v1000 = vsel %vm988, %v967, %v696
        %v1002 = vsel %vm988, %v969, %v698
        %v1004 = vsel %vm988, %v971, %v700
        %v1006 = vsel %vm988, %v973, %v702
        %v1008 = vsel %vm988, %v975, %v704
        %v1010 = vsel %vm988, %v977, %v706
        %v1012 = vsel %vm988, %v979, %v708
        %v1014 = vsel %vm988, %v981, %v710
        %v1016 = vsel %vm988, %v983, %v712
        %v1018 = vsel %vm988, %v985, %v714
        %v1020 = vsel %vm988, %v987, %v716
        %vm1021 = vcmask 97280
        %v1023 = vsel %vm1021, %v990, %v723
        %v1025 = vsel %vm1021, %v992, %v725
        %v1027 = vsel %vm1021, %v994, %v727
        %v1029 = vsel %vm1021, %v996, %v729
        %v1031 = vsel %vm1021, %v998, %v731
        %v1033 = vsel %vm1021, %v1000, %v733
        %v1035 = vsel %vm1021, %v1002, %v735
        %v1037 = vsel %vm1021, %v1004, %v737
        %v1039 = vsel %vm1021, %v1006, %v739
        %v1041 = vsel %vm1021, %v1008, %v741
        %v1043 = vsel %vm1021, %v1010, %v743
        %v1045 = vsel %vm1021, %v1012, %v745
        %v1047 = vsel %vm1021, %v1014, %v747
        %v1049 = vsel %vm1021, %v1016, %v749
        %v1051 = vsel %vm1021, %v1018, %v751
        %v1053 = vsel %vm1021, %v1020, %v753
        %vm1054 = vcmask 130048
        %v1056 = vsel %vm1054, %v1023, %v770
        %v1058 = vsel %vm1054, %v1025, %v772
        %v1060 = vsel %vm1054, %v1027, %v774
        %v1062 = vsel %vm1054, %v1029, %v776
        %v1064 = vsel %vm1054, %v1031, %v778
        %v1066 = vsel %vm1054, %v1033, %v780
        %v1068 = vsel %vm1054, %v1035, %v782
        %v1070 = vsel %vm1054, %v1037, %v784
        %v1072 = vsel %vm1054, %v1039, %v786
        %v1074 = vsel %vm1054, %v1041, %v788
        %v1076 = vsel %vm1054, %v1043, %v790
        %v1078 = vsel %vm1054, %v1045, %v792
        %v1080 = vsel %vm1054, %v1047, %v794
        %v1082 = vsel %vm1054, %v1049, %v796
        %v1084 = vsel %vm1054, %v1051, %v798
        %v1086 = vsel %vm1054, %v1053, %v800
        %vm1087 = vcmask 162816
        %v1089 = vsel %vm1087, %v1056, %v805
        %v1091 = vsel %vm1087, %v1058, %v807
        %v1093 = vsel %vm1087, %v1060, %v809
        %v1095 = vsel %vm1087, %v1062, %v811
        %v1097 = vsel %vm1087, %v1064, %v813
        %v1099 = vsel %vm1087, %v1066, %v815
        %v1101 = vsel %vm1087, %v1068, %v817
        %v1103 = vsel %vm1087, %v1070, %v819
        %v1105 = vsel %vm1087, %v1072, %v821
        %v1107 = vsel %vm1087, %v1074, %v823
        %v1109 = vsel %vm1087, %v1076, %v825
        %v1111 = vsel %vm1087, %v1078, %v827
        %v1113 = vsel %vm1087, %v1080, %v829
        %v1115 = vsel %vm1087, %v1082, %v831
        %v1117 = vsel %vm1087, %v1084, %v833
        %v1119 = vsel %vm1087, %v1086, %v835
        %vm1120 = vcmask 195584
        %v1122 = vsel %vm1120, %v1089, %v842
        %v1124 = vsel %vm1120, %v1091, %v844
        %v1126 = vsel %vm1120, %v1093, %v846
        %v1128 = vsel %vm1120, %v1095, %v848
        %v1130 = vsel %vm1120, %v1097, %v850
        %v1132 = vsel %vm1120, %v1099, %v852
        %v1134 = vsel %vm1120, %v1101, %v854
        %v1136 = vsel %vm1120, %v1103, %v856
        %v1138 = vsel %vm1120, %v1105, %v858
        %v1140 = vsel %vm1120, %v1107, %v860
        %v1142 = vsel %vm1120, %v1109, %v862
        %v1144 = vsel %vm1120, %v1111, %v864
        %v1146 = vsel %vm1120, %v1113, %v866
        %v1148 = vsel %vm1120, %v1115, %v868
        %v1150 = vsel %vm1120, %v1117, %v870
        %v1152 = vsel %vm1120, %v1119, %v872
        %vm1153 = vcmask 228352
        %v1155 = vsel %vm1153, %v1122, %v889
        %v1157 = vsel %vm1153, %v1124, %v891
        %v1159 = vsel %vm1153, %v1126, %v893
        %v1161 = vsel %vm1153, %v1128, %v895
        %v1163 = vsel %vm1153, %v1130, %v897
        %v1165 = vsel %vm1153, %v1132, %v899
        %v1167 = vsel %vm1153, %v1134, %v901
        %v1169 = vsel %vm1153, %v1136, %v903
        %v1171 = vsel %vm1153, %v1138, %v905
        %v1173 = vsel %vm1153, %v1140, %v907
        %v1175 = vsel %vm1153, %v1142, %v909
        %v1177 = vsel %vm1153, %v1144, %v911
        %v1179 = vsel %vm1153, %v1146, %v913
        %v1181 = vsel %vm1153, %v1148, %v915
        %v1183 = vsel %vm1153, %v1150, %v917
        %v1185 = vsel %vm1153, %v1152, %v919
        %vm1186 = vcmask 261120
        %v1188 = vsel %vm1186, %v1155, %v924
        %v1190 = vsel %vm1186, %v1157, %v926
        %v1192 = vsel %vm1186, %v1159, %v928
        %v1194 = vsel %vm1186, %v1161, %v930
        %v1196 = vsel %vm1186, %v1163, %v932
        %v1198 = vsel %vm1186, %v1165, %v934
        %v1200 = vsel %vm1186, %v1167, %v936
        %v1202 = vsel %vm1186, %v1169, %v938
        %v1204 = vsel %vm1186, %v1171, %v940
        %v1206 = vsel %vm1186, %v1173, %v942
        %v1208 = vsel %vm1186, %v1175, %v944
        %v1210 = vsel %vm1186, %v1177, %v946
        %v1212 = vsel %vm1186, %v1179, %v948
        %v1214 = vsel %vm1186, %v1181, %v950
        %v1216 = vsel %vm1186, %v1183, %v952
        %v1218 = vsel %vm1186, %v1185, %v954
        %v1219 = vld [vmem:[%s1] sm:$0xf]
        %v1220 = vld [vmem:[%s1 + $0x4] sm:$0xf]
        %v1221 = vld [vmem:[%s1 + $0x8] sm:$0xf]
        %v1222 = vld [vmem:[%s1 + $0xc] sm:$0xf]
        %v1223 = vld [vmem:[%s1 + $0x10] sm:$0x3]
        %v1229 = vunpack.c.l.b16 %v1219
        %v1230 = vunpack.c.l.b16 %v1220
        %v1231 = vunpack.c.l.b16 %v1221
        %v1232 = vunpack.c.l.b16 %v1222
        %v1233 = vunpack.c.l.b16 %v1223
        %v1234 = vpack.c.b16 %v1230, %v1229
        %v1235 = vpack.c.b16 %v1232, %v1231
        %v1236 = vpack.c.b16 %v1233, %v1233
        %vm1239 = vcmask 293888
        %v1240 = vsel %vm1239, %v1188, 0
        %v1242 = vsel %vm1239, %v1190, 0
        %v1244 = vsel %vm1239, %v1192, 0
        %v1246 = vsel %vm1239, %v1194, 0
        %v1248 = vsel %vm1239, %v1196, 0
        %v1250 = vsel %vm1239, %v1198, 0
        %v1252 = vsel %vm1239, %v1200, 0
        %v1254 = vsel %vm1239, %v1202, 0
        %v1256 = vsel %vm1239, %v1204, 0
        %v1258 = vsel %vm1239, %v1206, 0
        %v1260 = vsel %vm1239, %v1208, 0
        %v1262 = vsel %vm1239, %v1210, 0
        %v1264 = vsel %vm1239, %v1212, 0
        %v1266 = vsel %vm1239, %v1214, 0
        %v1268 = vsel %vm1239, %v1216, 0
        %v1270 = vsel %vm1239, %v1218, 0
        %vm1272 = vcmask 1041408
        %v1274 = vsel %vm1272, %v1236, 0
        %1276 = vmatprep.subr.bf16.mxu0 0
        %1277 = vmatpush1.bf16.msra.mxu0 0
        %1278 = vmatprep.subr.bf16.mxu0 0
        %1279 = vmatpush1.bf16.msra.mxu0 0
        %1280 = vmatprep.subr.bf16.mxu0 0
        %1281 = vmatpush1.bf16.msra.mxu0 0
        %1282 = vmatprep.subr.bf16.mxu0 0
        %1283 = vmatpush1.bf16.msra.mxu0 0
        %1284 = vmatprep.subr.bf16.mxu0 0
        %1285 = vmatpush1.bf16.msra.mxu0 0
        %1286 = vmatprep.subr.bf16.mxu0 0
        %1287 = vmatpush1.bf16.msra.mxu0 %v1274
        %1288 = vmatprep.subr.bf16.mxu0 0
        %1289 = vmatpush1.bf16.msra.mxu0 %v1235
        %1290 = vmatprep.subr.bf16.mxu0 0
        %1291 = vmatpush1.bf16.msra.mxu0 %v1234
        %1292 = vmatprep.subr.bf16.mxu0 0
        %1293 = vmatpush2.bf16.msra.mxu0 0
        %1294 = vmatprep.subr.bf16.mxu0 0
        %1295 = vmatpush2.bf16.msra.mxu0 0
        %1296 = vmatprep.subr.bf16.mxu0 0
        %1297 = vmatpush2.bf16.msra.mxu0 0
        %1298 = vmatprep.subr.bf16.mxu0 0
        %1299 = vmatpush2.bf16.msra.mxu0 0
        %1300 = vmatprep.subr.bf16.mxu0 0
        %1301 = vmatpush2.bf16.msra.mxu0 0
        %1302 = vmatprep.subr.bf16.mxu0 0
        %1303 = vmatpush2.bf16.msra.mxu0 0
        %1304 = vmatprep.subr.bf16.mxu0 0
        %1305 = vmatpush2.bf16.msra.mxu0 0
        %1306 = vmatprep.subr.bf16.mxu0 0
        %1307 = vmatpush2.bf16.msra.mxu0 0
        %1308 = vmatprep.mubr.bf16.mxu0 0
        %1309 = vmatmul.mubr.bf16.gmra.mxu0 %v1240
        %v1310 = vpop.f32.mrf.mxu0
        %v1311 = vadd.f32 0.0, %v1310
        %v1312 = vpop.f32.mrf.mxu0
        %v1313 = vpop.f32.mrf.mxu0
        %v1314 = vadd.f32 0.0, %v1313
        %v1315 = vpop.f32.mrf.mxu0
        %1316 = vmatprep.mubr.bf16.mxu0 0
        %1317 = vmatmul.mubr.bf16.gmra.mxu0 %v1242
        %v1318 = vpop.f32.mrf.mxu0
        %v1319 = vadd.f32 0.0, %v1318
        %v1320 = vpop.f32.mrf.mxu0
        %v1321 = vpop.f32.mrf.mxu0
        %v1322 = vadd.f32 0.0, %v1321
        %v1323 = vpop.f32.mrf.mxu0
        %1324 = vmatprep.mubr.bf16.mxu0 0
        %1325 = vmatmul.mubr.bf16.gmra.mxu0 %v1244
        %v1326 = vpop.f32.mrf.mxu0
        %v1327 = vadd.f32 0.0, %v1326
        %v1328 = vpop.f32.mrf.mxu0
        %v1329 = vpop.f32.mrf.mxu0
        %v1330 = vadd.f32 0.0, %v1329
        %v1331 = vpop.f32.mrf.mxu0
        %1332 = vmatprep.mubr.bf16.mxu0 0
        %1333 = vmatmul.mubr.bf16.gmra.mxu0 %v1246
        %v1334 = vpop.f32.mrf.mxu0
        %v1335 = vadd.f32 0.0, %v1334
        %v1336 = vpop.f32.mrf.mxu0
        %v1337 = vpop.f32.mrf.mxu0
        %v1338 = vadd.f32 0.0, %v1337
        %v1339 = vpop.f32.mrf.mxu0
        %1340 = vmatprep.mubr.bf16.mxu0 0
        %1341 = vmatmul.mubr.bf16.gmra.mxu0 %v1248
        %v1342 = vpop.f32.mrf.mxu0
        %v1343 = vadd.f32 0.0, %v1342
        %v1344 = vpop.f32.mrf.mxu0
        %v1345 = vpop.f32.mrf.mxu0
        %v1346 = vadd.f32 0.0, %v1345
        %v1347 = vpop.f32.mrf.mxu0
        %1348 = vmatprep.mubr.bf16.mxu0 0
        %1349 = vmatmul.mubr.bf16.gmra.mxu0 %v1250
        %v1350 = vpop.f32.mrf.mxu0
        %v1351 = vadd.f32 0.0, %v1350
        %v1352 = vpop.f32.mrf.mxu0
        %v1353 = vpop.f32.mrf.mxu0
        %v1354 = vadd.f32 0.0, %v1353
        %v1355 = vpop.f32.mrf.mxu0
        %1356 = vmatprep.mubr.bf16.mxu0 0
        %1357 = vmatmul.mubr.bf16.gmra.mxu0 %v1252
        %v1358 = vpop.f32.mrf.mxu0
        %v1359 = vadd.f32 0.0, %v1358
        %v1360 = vpop.f32.mrf.mxu0
        %v1361 = vpop.f32.mrf.mxu0
        %v1362 = vadd.f32 0.0, %v1361
        %v1363 = vpop.f32.mrf.mxu0
        %1364 = vmatprep.mubr.bf16.mxu0 0
        %1365 = vmatmul.mubr.bf16.gmra.mxu0 %v1254
        %v1366 = vpop.f32.mrf.mxu0
        %v1367 = vadd.f32 0.0, %v1366
        %v1368 = vpop.f32.mrf.mxu0
        %v1369 = vpop.f32.mrf.mxu0
        %v1370 = vadd.f32 0.0, %v1369
        %v1371 = vpop.f32.mrf.mxu0
        %1372 = vmatprep.mubr.bf16.mxu0 0
        %1373 = vmatmul.mubr.bf16.gmra.mxu0 %v1256
        %v1374 = vpop.f32.mrf.mxu0
        %v1375 = vadd.f32 0.0, %v1374
        %v1376 = vpop.f32.mrf.mxu0
        %v1377 = vpop.f32.mrf.mxu0
        %v1378 = vadd.f32 0.0, %v1377
        %v1379 = vpop.f32.mrf.mxu0
        %1380 = vmatprep.mubr.bf16.mxu0 0
        %1381 = vmatmul.mubr.bf16.gmra.mxu0 %v1258
        %v1382 = vpop.f32.mrf.mxu0
        %v1383 = vadd.f32 0.0, %v1382
        %v1384 = vpop.f32.mrf.mxu0
        %v1385 = vpop.f32.mrf.mxu0
        %v1386 = vadd.f32 0.0, %v1385
        %v1387 = vpop.f32.mrf.mxu0
        %1388 = vmatprep.mubr.bf16.mxu0 0
        %1389 = vmatmul.mubr.bf16.gmra.mxu0 %v1260
        %v1390 = vpop.f32.mrf.mxu0
        %v1391 = vadd.f32 0.0, %v1390
        %v1392 = vpop.f32.mrf.mxu0
        %v1393 = vpop.f32.mrf.mxu0
        %v1394 = vadd.f32 0.0, %v1393
        %v1395 = vpop.f32.mrf.mxu0
        %1396 = vmatprep.mubr.bf16.mxu0 0
        %1397 = vmatmul.mubr.bf16.gmra.mxu0 %v1262
        %v1398 = vpop.f32.mrf.mxu0
        %v1399 = vadd.f32 0.0, %v1398
        %v1400 = vpop.f32.mrf.mxu0
        %v1401 = vpop.f32.mrf.mxu0
        %v1402 = vadd.f32 0.0, %v1401
        %v1403 = vpop.f32.mrf.mxu0
        %1404 = vmatprep.mubr.bf16.mxu0 0
        %1405 = vmatmul.mubr.bf16.gmra.mxu0 %v1264
        %v1406 = vpop.f32.mrf.mxu0
        %v1407 = vadd.f32 0.0, %v1406
        %v1408 = vpop.f32.mrf.mxu0
        %v1409 = vpop.f32.mrf.mxu0
        %v1410 = vadd.f32 0.0, %v1409
        %v1411 = vpop.f32.mrf.mxu0
        %1412 = vmatprep.mubr.bf16.mxu0 0
        %1413 = vmatmul.mubr.bf16.gmra.mxu0 %v1266
        %v1414 = vpop.f32.mrf.mxu0
        %v1415 = vadd.f32 0.0, %v1414
        %v1416 = vpop.f32.mrf.mxu0
        %v1417 = vpop.f32.mrf.mxu0
        %v1418 = vadd.f32 0.0, %v1417
        %v1419 = vpop.f32.mrf.mxu0
        %1420 = vmatprep.mubr.bf16.mxu0 0
        %1421 = vmatmul.mubr.bf16.gmra.mxu0 %v1268
        %v1422 = vpop.f32.mrf.mxu0
        %v1423 = vadd.f32 0.0, %v1422
        %v1424 = vpop.f32.mrf.mxu0
        %v1425 = vpop.f32.mrf.mxu0
        %v1426 = vadd.f32 0.0, %v1425
        %v1427 = vpop.f32.mrf.mxu0
        %1428 = vmatprep.mubr.bf16.mxu0 0
        %1429 = vmatmul.mubr.bf16.gmra.mxu0 %v1270
        %v1430 = vpop.f32.mrf.mxu0
        %v1431 = vadd.f32 0.0, %v1430
        %v1432 = vpop.f32.mrf.mxu0
        %v1433 = vpop.f32.mrf.mxu0
        %v1434 = vadd.f32 0.0, %v1433
        %v1435 = vpop.f32.mrf.mxu0
        %1436 = vdwg.mxu0
        %v1437 = vadd.f32 %v1311, %v1314
        %v1438 = vadd.f32 %v1437, %v1319
        %v1439 = vadd.f32 %v1438, %v1322
        %v1440 = vadd.f32 %v1439, %v1327
        %v1441 = vadd.f32 %v1440, %v1330
        %v1442 = vadd.f32 %v1441, %v1335
        %v1443 = vadd.f32 %v1442, %v1338
        %v1444 = vadd.f32 %v1443, %v1343
        %v1445 = vadd.f32 %v1444, %v1346
        %v1446 = vadd.f32 %v1445, %v1351
        %v1447 = vadd.f32 %v1446, %v1354
        %v1448 = vadd.f32 %v1447, %v1359
        %v1449 = vadd.f32 %v1448, %v1362
        %v1450 = vadd.f32 %v1449, %v1367
        %v1451 = vadd.f32 %v1450, %v1370
        %v1452 = vadd.f32 %v1451, %v1375
        %v1453 = vadd.f32 %v1452, %v1378
        %v1454 = vadd.f32 %v1453, %v1383
        %v1455 = vadd.f32 %v1454, %v1386
        %v1456 = vadd.f32 %v1455, %v1391
        %v1457 = vadd.f32 %v1456, %v1394
        %v1458 = vadd.f32 %v1457, %v1399
        %v1459 = vadd.f32 %v1458, %v1402
        %v1460 = vadd.f32 %v1459, %v1407
        %v1461 = vadd.f32 %v1460, %v1410
        %v1462 = vadd.f32 %v1461, %v1415
        %v1463 = vadd.f32 %v1462, %v1418
        %v1464 = vadd.f32 %v1463, %v1423
        %v1465 = vadd.f32 %v1464, %v1426
        %v1466 = vadd.f32 %v1465, %v1431
        %v1467 = vadd.f32 %v1466, %v1434
        %v1468 = vrot.slane %v1467, 4
        %v1469 = vadd.f32 %v1467, %v1468
        %v1470 = vrot.slane %v1469, 2
        %v1471 = vadd.f32 %v1469, %v1470
        %v1472 = vrot.slane %v1471, 1
        %v1473 = vadd.f32 %v1471, %v1472
        %v1474 = vmul.f32 %v1311, %v1311
        %v1475 = vmul.f32 %v1314, %v1314
        %v1476 = vmul.f32 %v1319, %v1319
        %v1477 = vmul.f32 %v1322, %v1322
        %v1478 = vmul.f32 %v1327, %v1327
        %v1479 = vmul.f32 %v1330, %v1330
        %v1480 = vmul.f32 %v1335, %v1335
        %v1481 = vmul.f32 %v1338, %v1338
        %v1482 = vmul.f32 %v1343, %v1343
        %v1483 = vmul.f32 %v1346, %v1346
        %v1484 = vmul.f32 %v1351, %v1351
        %v1485 = vmul.f32 %v1354, %v1354
        %v1486 = vmul.f32 %v1359, %v1359
        %v1487 = vmul.f32 %v1362, %v1362
        %v1488 = vmul.f32 %v1367, %v1367
        %v1489 = vmul.f32 %v1370, %v1370
        %v1490 = vmul.f32 %v1375, %v1375
        %v1491 = vmul.f32 %v1378, %v1378
        %v1492 = vmul.f32 %v1383, %v1383
        %v1493 = vmul.f32 %v1386, %v1386
        %v1494 = vmul.f32 %v1391, %v1391
        %v1495 = vmul.f32 %v1394, %v1394
        %v1496 = vmul.f32 %v1399, %v1399
        %v1497 = vmul.f32 %v1402, %v1402
        %v1498 = vmul.f32 %v1407, %v1407
        %v1499 = vmul.f32 %v1410, %v1410
        %v1500 = vmul.f32 %v1415, %v1415
        %v1501 = vmul.f32 %v1418, %v1418
        %v1502 = vmul.f32 %v1423, %v1423
        %v1503 = vmul.f32 %v1426, %v1426
        %v1504 = vmul.f32 %v1431, %v1431
        %v1505 = vmul.f32 %v1434, %v1434
        %v1506 = vadd.f32 %v1474, %v1475
        %v1507 = vadd.f32 %v1506, %v1476
        %v1508 = vadd.f32 %v1507, %v1477
        %v1509 = vadd.f32 %v1508, %v1478
        %v1510 = vadd.f32 %v1509, %v1479
        %v1511 = vadd.f32 %v1510, %v1480
        %v1512 = vadd.f32 %v1511, %v1481
        %v1513 = vadd.f32 %v1512, %v1482
        %v1514 = vadd.f32 %v1513, %v1483
        %v1515 = vadd.f32 %v1514, %v1484
        %v1516 = vadd.f32 %v1515, %v1485
        %v1517 = vadd.f32 %v1516, %v1486
        %v1518 = vadd.f32 %v1517, %v1487
        %v1519 = vadd.f32 %v1518, %v1488
        %v1520 = vadd.f32 %v1519, %v1489
        %v1521 = vadd.f32 %v1520, %v1490
        %v1522 = vadd.f32 %v1521, %v1491
        %v1523 = vadd.f32 %v1522, %v1492
        %v1524 = vadd.f32 %v1523, %v1493
        %v1525 = vadd.f32 %v1524, %v1494
        %v1526 = vadd.f32 %v1525, %v1495
        %v1527 = vadd.f32 %v1526, %v1496
        %v1528 = vadd.f32 %v1527, %v1497
        %v1529 = vadd.f32 %v1528, %v1498
        %v1530 = vadd.f32 %v1529, %v1499
        %v1531 = vadd.f32 %v1530, %v1500
        %v1532 = vadd.f32 %v1531, %v1501
        %v1533 = vadd.f32 %v1532, %v1502
        %v1534 = vadd.f32 %v1533, %v1503
        %v1535 = vadd.f32 %v1534, %v1504
        %v1536 = vadd.f32 %v1535, %v1505
        %v1537 = vrot.slane %v1536, 4
        %v1538 = vadd.f32 %v1536, %v1537
        %v1539 = vrot.slane %v1538, 2
        %v1540 = vadd.f32 %v1538, %v1539
        %v1541 = vrot.slane %v1540, 1
        %v1542 = vadd.f32 %v1540, %v1541
        %vm1543 = vcmask 1040384
        %v1544 = vsel %vm1543, %v1473, %v1542
        %1545 = vst [vmem:[%s217] sm:$0x3] %v1544
        %v1546 = vpack.c.bf16 %v1314, %v1311
        %v1547 = vpack.c.bf16 %v1322, %v1319
        %v1548 = vpack.c.bf16 %v1330, %v1327
        %v1549 = vpack.c.bf16 %v1338, %v1335
        %v1550 = vpack.c.bf16 %v1346, %v1343
        %v1551 = vpack.c.bf16 %v1354, %v1351
        %v1552 = vpack.c.bf16 %v1362, %v1359
        %v1553 = vpack.c.bf16 %v1370, %v1367
        %v1554 = vpack.c.bf16 %v1378, %v1375
        %v1555 = vpack.c.bf16 %v1386, %v1383
        %v1556 = vpack.c.bf16 %v1394, %v1391
        %v1557 = vpack.c.bf16 %v1402, %v1399
        %v1558 = vpack.c.bf16 %v1410, %v1407
        %v1559 = vpack.c.bf16 %v1418, %v1415
        %v1560 = vpack.c.bf16 %v1426, %v1423
        %v1561 = vpack.c.bf16 %v1434, %v1431
        %v1578 = vunpack.c.l.b16 %v1546
        %v1579 = vunpack.c.h.b16 %v1546
        %v1580 = vunpack.c.l.b16 %v1547
        %v1581 = vunpack.c.h.b16 %v1547
        %v1582 = vunpack.c.l.b16 %v1548
        %v1583 = vunpack.c.h.b16 %v1548
        %v1584 = vunpack.c.l.b16 %v1549
        %v1585 = vunpack.c.h.b16 %v1549
        %v1586 = vunpack.c.l.b16 %v1550
        %v1587 = vunpack.c.h.b16 %v1550
        %v1588 = vunpack.c.l.b16 %v1551
        %v1589 = vunpack.c.h.b16 %v1551
        %v1590 = vunpack.c.l.b16 %v1552
        %v1591 = vunpack.c.h.b16 %v1552
        %v1592 = vunpack.c.l.b16 %v1553
        %v1593 = vunpack.c.h.b16 %v1553
        %v1594 = vunpack.c.l.b16 %v1554
        %v1595 = vunpack.c.h.b16 %v1554
        %v1596 = vunpack.c.l.b16 %v1555
        %v1597 = vunpack.c.h.b16 %v1555
        %v1598 = vunpack.c.l.b16 %v1556
        %v1599 = vunpack.c.h.b16 %v1556
        %v1600 = vunpack.c.l.b16 %v1557
        %v1601 = vunpack.c.h.b16 %v1557
        %v1602 = vunpack.c.l.b16 %v1558
        %v1603 = vunpack.c.h.b16 %v1558
        %v1604 = vunpack.c.l.b16 %v1559
        %v1605 = vunpack.c.h.b16 %v1559
        %v1606 = vunpack.c.l.b16 %v1560
        %v1607 = vunpack.c.h.b16 %v1560
        %v1608 = vunpack.c.l.b16 %v1561
        %v1609 = vunpack.c.h.b16 %v1561
        %v1610 = vpack.c.b16 %v1578, %v1578
        %v1611 = vpack.c.b16 %v1579, %v1579
        %v1612 = vpack.c.b16 %v1580, %v1580
        %v1613 = vpack.c.b16 %v1581, %v1581
        %v1614 = vpack.c.b16 %v1582, %v1582
        %v1615 = vpack.c.b16 %v1583, %v1583
        %v1616 = vpack.c.b16 %v1584, %v1584
        %v1617 = vpack.c.b16 %v1585, %v1585
        %v1618 = vpack.c.b16 %v1586, %v1586
        %v1619 = vpack.c.b16 %v1587, %v1587
        %v1620 = vpack.c.b16 %v1588, %v1588
        %v1621 = vpack.c.b16 %v1589, %v1589
        %v1622 = vpack.c.b16 %v1590, %v1590
        %v1623 = vpack.c.b16 %v1591, %v1591
        %v1624 = vpack.c.b16 %v1592, %v1592
        %v1625 = vpack.c.b16 %v1593, %v1593
        %v1626 = vpack.c.b16 %v1594, %v1594
        %v1627 = vpack.c.b16 %v1595, %v1595
        %v1628 = vpack.c.b16 %v1596, %v1596
        %v1629 = vpack.c.b16 %v1597, %v1597
        %v1630 = vpack.c.b16 %v1598, %v1598
        %v1631 = vpack.c.b16 %v1599, %v1599
        %v1632 = vpack.c.b16 %v1600, %v1600
        %v1633 = vpack.c.b16 %v1601, %v1601
        %v1634 = vpack.c.b16 %v1602, %v1602
        %v1635 = vpack.c.b16 %v1603, %v1603
        %v1636 = vpack.c.b16 %v1604, %v1604
        %v1637 = vpack.c.b16 %v1605, %v1605
        %v1638 = vpack.c.b16 %v1606, %v1606
        %v1639 = vpack.c.b16 %v1607, %v1607
        %v1640 = vpack.c.b16 %v1608, %v1608
        %v1641 = vpack.c.b16 %v1609, %v1609
        %1674 = vst [vmem:[%s210] sm:$0xf] %v1610
        %1675 = vst [vmem:[%s210 + $0x4] sm:$0xf] %v1611
        %1676 = vst [vmem:[%s210 + $0x8] sm:$0xf] %v1612
        %1677 = vst [vmem:[%s210 + $0xc] sm:$0xf] %v1613
        %1678 = vst [vmem:[%s210 + $0x10] sm:$0xf] %v1614
        %1679 = vst [vmem:[%s210 + $0x14] sm:$0xf] %v1615
        %1680 = vst [vmem:[%s210 + $0x18] sm:$0xf] %v1616
        %1681 = vst [vmem:[%s210 + $0x1c] sm:$0xf] %v1617
        %1682 = vst [vmem:[%s210 + $0x20] sm:$0xf] %v1618
        %1683 = vst [vmem:[%s210 + $0x24] sm:$0xf] %v1619
        %1684 = vst [vmem:[%s210 + $0x28] sm:$0xf] %v1620
        %1685 = vst [vmem:[%s210 + $0x2c] sm:$0xf] %v1621
        %1686 = vst [vmem:[%s210 + $0x30] sm:$0xf] %v1622
        %1687 = vst [vmem:[%s210 + $0x34] sm:$0xf] %v1623
        %1688 = vst [vmem:[%s210 + $0x38] sm:$0xf] %v1624
        %1689 = vst [vmem:[%s210 + $0x3c] sm:$0xf] %v1625
        %1690 = vst [vmem:[%s210 + $0x40] sm:$0xf] %v1626
        %1691 = vst [vmem:[%s210 + $0x44] sm:$0xf] %v1627
        %1692 = vst [vmem:[%s210 + $0x48] sm:$0xf] %v1628
        %1693 = vst [vmem:[%s210 + $0x4c] sm:$0xf] %v1629
        %1694 = vst [vmem:[%s210 + $0x50] sm:$0xf] %v1630
        %1695 = vst [vmem:[%s210 + $0x54] sm:$0xf] %v1631
        %1696 = vst [vmem:[%s210 + $0x58] sm:$0xf] %v1632
        %1697 = vst [vmem:[%s210 + $0x5c] sm:$0xf] %v1633
        %1698 = vst [vmem:[%s210 + $0x60] sm:$0xf] %v1634
        %1699 = vst [vmem:[%s210 + $0x64] sm:$0xf] %v1635
        %1700 = vst [vmem:[%s210 + $0x68] sm:$0xf] %v1636
        %1701 = vst [vmem:[%s210 + $0x6c] sm:$0xf] %v1637
        %1702 = vst [vmem:[%s210 + $0x70] sm:$0xf] %v1638
        %1703 = vst [vmem:[%s210 + $0x74] sm:$0xf] %v1639
        %1704 = vst [vmem:[%s210 + $0x78] sm:$0xf] %v1640
        %1705 = vst [vmem:[%s210 + $0x7c] sm:$0xf] %v1641
        %s1706 = sand.u32 %s112, 1
        %s1707 = scalar_lea.sflag [#allocation3], %s1706
        %s1708 = sand.u32 %s112, 1
        %s1709 = smul.addr %s1708, 128
        %s1710 = scalar_lea.vmem [#allocation2], %s1709
        %s1711 = sand.u32 %s140, 1
        %s1712 = scalar_lea.sflag [#allocation5], %s1711
        %s1713 = sand.u32 %s140, 1
        %s1714 = smul.addr %s1713, 2
        %s1715 = scalar_lea.vmem [#allocation4], %s1714
        // Predicated region
        $region33: #{tpu_custom_call.1} parent=31 // pred_check
          %p1716 = pneg %p122
        $region34: #{tpu_custom_call.1} parent=31 // pred_check_branch
          %1718 = sbr.rel (%p1716) target = $region36
        $region35: #{tpu_custom_call.1} parent=31 // pred_region
          %s1719 = smul.u32 32, %s27
          %s1721 = ssub.s32 2048, 2048
          %1722 = vsyncadd %s1707, %s1721
          %s1723 = smul.addr %s26, 32
          %s1724 = sadd.s32 %s1719, %s1723
          %s1725 = smul.addr %s1724, 64
          %s1726 = scalar_lea.hbm %s3, %s1725
          %s1727 = sshll.u32 %s1710, 4
          %s1728 = int_to_ptr.vmem [resolvable:$true] %s1727
          %1733 = dma.vmem_to_hbm [thread:$0]  %s1728, 2048, %s1726, %s1707, 64, 64, 4
        $region36: #{tpu_custom_call.1} parent=31 // pred_fallthru
          _
        // Predicated region
        $region37: #{tpu_custom_call.1} parent=31 // pred_check
          %p1734 = pneg %p150
        $region38: #{tpu_custom_call.1} parent=31 // pred_check_branch
          %1736 = sbr.rel (%p1734) target = $region40
        $region39: #{tpu_custom_call.1} parent=31 // pred_region
          %s1738 = ssub.s32 32, 32
          %1739 = vsyncadd %s1712, %s1738
          %s1740 = sadd.s32 %s27, %s26
          %s1741 = smul.addr %s1740, 32
          %s1742 = scalar_lea.hbm %s4, %s1741
          %s1744 = sshll.u32 %s1715, 4
          %s1745 = int_to_ptr.vmem [resolvable:$true] %s1744
          %1747 = dma.vmem_to_hbm [thread:$0]  %s1745, 32, %s1742, %s1712
        $region40: #{tpu_custom_call.1} parent=31 // pred_fallthru
          _
      $region32: #{tpu_custom_call.1} parent=5 // pred_fallthru
        _
      %p1748 = scmp.le.s32.totalorder 2, %s17
      // Predicated region
      $region41: #{tpu_custom_call.1} parent=5 // pred_check
        %p1749 = pneg %p1748
      $region42: #{tpu_custom_call.1} parent=5 // pred_check_branch
        %1751 = sbr.rel (%p1749) target = $region44
      $region43: #{tpu_custom_call.1} parent=5 // pred_region
        %s1752 = ssub.s32 %s17, 2
        // Predicated region
        $region45: #{tpu_custom_call.1} parent=43 // pred_check
          %p1753 = pneg %p128
        $region46: #{tpu_custom_call.1} parent=43 // pred_check_branch
          %1755 = sbr.rel (%p1753) target = $region48
        $region47: #{tpu_custom_call.1} parent=43 // pred_region
          %s1756 = sand.u32 %s113, 1
          %s1757 = scalar_lea.sflag [#allocation3], %s1756
          %s1758 = sand.u32 %s113, 1
          %s1759 = smul.addr %s1758, 128
          %s1760 = scalar_lea.vmem [#allocation2], %s1759
          %1761 = dma.done %s1757, 2048
        $region48: #{tpu_custom_call.1} parent=43 // pred_fallthru
          _
        // Predicated region
        $region49: #{tpu_custom_call.1} parent=43 // pred_check
          %p1762 = pneg %p156
        $region50: #{tpu_custom_call.1} parent=43 // pred_check_branch
          %1764 = sbr.rel (%p1762) target = $region52
        $region51: #{tpu_custom_call.1} parent=43 // pred_region
          %s1765 = sand.u32 %s141, 1
          %s1766 = scalar_lea.sflag [#allocation5], %s1765
          %s1767 = sand.u32 %s141, 1
          %s1768 = smul.addr %s1767, 2
          %s1769 = scalar_lea.vmem [#allocation4], %s1768
          %1770 = dma.done %s1766, 32
        $region52: #{tpu_custom_call.1} parent=43 // pred_fallthru
          _
      $region44: #{tpu_custom_call.1} parent=5 // pred_fallthru
        _
    $region6: #{tpu_custom_call.1} parent=1 // loop_footer
      %s21 = sadd.s32 1, %s17
    $region7: #{tpu_custom_call.1} parent=1 // loop_footer_branch
      %16 = sbr.rel target = $region3
    $region8: #{tpu_custom_call.1} parent=1 // loop_exit
      _
    %1771 = vsyncpa [#allocation3], 1
    %s1772 = scalar_lea.sflag [#allocation3], 1
    %1773 = vsyncpa %s1772, 1
    %1774 = vsyncpa [#allocation5], 1
    %s1775 = scalar_lea.sflag [#allocation5], 1
    %1776 = vsyncpa %s1775, 1

</llo_original>
